<compile_context>
chip_gen: v5e
topology: v5e:2x2
jax: 0.10.0
libtpu: 0.0.40
codegen_flags: <defaults>
</compile_context>

<pallas_src>
import functools

import jax
import jax.numpy as jnp
from jax import lax
from jax.experimental import pallas as pl
from jax.experimental.pallas import tpu as pltpu

LANE = 128


def _conv2d_kernel(x_ref, w_ref, o_ref, im2col_ref, *pad_scratch,
                   kh, kw, stride, padding, h, w, h_out, w_out):
    """One (batch, C_out-tile) grid step.

    x_ref:      (1, H, W, C_in)        NHWC input for one batch element
    w_ref:      (kh*kw*C_in, TCO)      flattened weight tile (TCO output chans)
    o_ref:      (1, Ho, Wo, TCO)
    im2col_ref: (Ho*Wo, kh*kw*C_in)    VMEM scratch, built once per batch elem
    pad_scratch (only if padding > 0): (Hp, Wp, C_in) zero-padded image scratch
    """
    c_in = x_ref.shape[-1]
    tco = o_ref.shape[-1]
    k_dim = kh * kw * c_in
    m = h_out * w_out

    # The im2col operand depends only on the batch element, not on the C_out
    # tile: build it once (co == 0) and reuse it for every C_out tile.  The co
    # grid axis is "arbitrary" (sequential) so this carried scratch is safe.
    @pl.when(pl.program_id(1) == 0)
    def _build_im2col():
        if padding > 0:
            xp_ref = pad_scratch[0]
            wp = w + 2 * padding
            # Zero ONLY the padding ring -- the interior is overwritten below,
            # so no full-image memset and no padded copy ever touches HBM.
            zrow = jnp.zeros((padding, wp, c_in), xp_ref.dtype)
            xp_ref[:padding, :, :] = zrow
            xp_ref[padding + h:, :, :] = zrow
            zcol = jnp.zeros((h, padding, c_in), xp_ref.dtype)
            xp_ref[padding:padding + h, :padding, :] = zcol
            xp_ref[padding:padding + h, padding + w:, :] = zcol
            xp_ref[padding:padding + h, padding:padding + w, :] = x_ref[0]
            xp = xp_ref[...]
        else:
            xp = x_ref[0]

        # im2col: each of the kh*kw window taps is a dense-lane slice (strides
        # only ever hit H/W, never the channel/lane axis).  Concatenating the
        # taps along the lane axis folds the whole window into one MXU
        # contraction with K = kh*kw*C_in, with a single reshape per step.
        taps = []
        for ki in range(kh):
            for kj in range(kw):
                start = (ki, kj, 0)
                limit = (ki + stride * (h_out - 1) + 1,
                         kj + stride * (w_out - 1) + 1,
                         c_in)
                if stride == 1:
                    patch = lax.slice(xp, start, limit)
                else:
                    # TODO(synk): for stride > 1 a one-time phase reshape of xp
                    # would avoid sublane-strided slices; kept simple here.
                    patch = lax.slice(xp, start, limit, (stride, stride, 1))
                taps.append(patch)
        im2col = jnp.concatenate(taps, axis=-1)           # (Ho, Wo, kh*kw*C_in)
        im2col_ref[...] = im2col.reshape(m, k_dim)

    # One big matmul per C_out tile; f32 accumulation on the MXU.
    acc = jnp.dot(im2col_ref[...], w_ref[...],
                  preferred_element_type=jnp.float32)      # (Ho*Wo, TCO)
    o_ref[...] = acc.reshape(1, h_out, w_out, tco).astype(o_ref.dtype)


def _pick_vmem_limit_bytes() -> int:
    # Generation-aware scoped-VMEM budget: ~3/4 of physical VMEM, capped at
    # 100 MiB (v5e/v6e: 128 MiB physical -> ~100 MiB; v7x: 64 MiB -> 48 MiB).
    try:
        cap = int(getattr(pltpu.get_tpu_info(), "vmem_capacity_bytes",
                          128 * 1024 * 1024))
    except Exception:  # not on a TPU / API unavailable
        cap = 128 * 1024 * 1024
    return int(min(cap * 3 // 4, 100 * 1024 * 1024))


def conv2d(x, weight, stride: int = 1, padding: int = 0):
    """Pallas TPU equivalent of F.conv2d(x, weight, None, stride, padding).

    x:      (N, C_in, H, W)        (NCHW, PyTorch layout)
    weight: (C_out, C_in, kH, kW)  (OIHW, PyTorch layout)
    returns (N, C_out, Ho, Wo)
    """
    n, c_in, h, w = x.shape
    c_out, c_in_w, kh, kw = weight.shape
    assert c_in == c_in_w, (c_in, c_in_w)

    h_out = (h + 2 * padding - kh) // stride + 1
    w_out = (w + 2 * padding - kw) // stride + 1
    hp, wp = h + 2 * padding, w + 2 * padding
    k_dim = kh * kw * c_in
    m = h_out * w_out

    # Lane-dense layouts: channels-last activations (C_in on the 128-lane axis
    # for the contraction) and a (kh*kw*C_in, C_out) weight matrix whose C_out
    # columns are zero-padded to a multiple of 128 so every output store is an
    # unmasked, lane-dense vst and the MXU N dimension is full.
    x_nhwc = jnp.transpose(x, (0, 2, 3, 1))                     # (N, H, W, C_in)
    w2d = jnp.transpose(weight, (2, 3, 1, 0)).reshape(k_dim, c_out)
    c_out_pad = pl.cdiv(c_out, LANE) * LANE
    if c_out_pad != c_out:
        w2d = jnp.pad(w2d, ((0, 0), (0, c_out_pad - c_out)))    # zero columns

    # C_out tile: keep the weight/output tile modest but lane-aligned.
    if c_out_pad <= 512:
        tco = c_out_pad
    elif c_out_pad % 256 == 0:
        tco = 256
    else:
        tco = LANE
    n_co = c_out_pad // tco

    scratch_shapes = [pltpu.VMEM((m, k_dim), x.dtype)]           # im2col buffer
    if padding > 0:
        scratch_shapes.append(pltpu.VMEM((hp, wp, c_in), x.dtype))

    kernel = functools.partial(
        _conv2d_kernel,
        kh=kh, kw=kw, stride=stride, padding=padding,
        h=h, w=w, h_out=h_out, w_out=w_out,
    )

    # Grid (batch, C_out-tile): the image + im2col scratch stay resident across
    # C_out tiles; batch is "parallel" (v7x 2-TC batch sharding), co is
    # "arbitrary" because the im2col/padded scratch is carried across it.
    # TODO(synk): for weight-dominated layers (kh*kw*C_in*C_out bytes >> image
    # bytes) flip the grid to (n_co, n); for very large images add a halo'd
    # row-tiling grid axis so per-step blocks fit v7x's 64 MiB VMEM.
    out_nhwc = pl.pallas_call(
        kernel,
        out_shape=jax.ShapeDtypeStruct((n, h_out, w_out, c_out_pad), x.dtype),
        grid_spec=pltpu.PrefetchScalarGridSpec(
            num_scalar_prefetch=0,
            grid=(n, n_co),
            in_specs=[
                pl.BlockSpec((1, h, w, c_in), lambda b, co: (b, 0, 0, 0)),
                pl.BlockSpec((k_dim, tco), lambda b, co: (0, co)),
            ],
            out_specs=pl.BlockSpec((1, h_out, w_out, tco),
                                   lambda b, co: (b, 0, 0, co)),
            scratch_shapes=scratch_shapes,
        ),
        compiler_params=pltpu.CompilerParams(
            dimension_semantics=("parallel", "arbitrary"),
            vmem_limit_bytes=_pick_vmem_limit_bytes(),
        ),
    )(x_nhwc, w2d)

    if c_out_pad != c_out:
        out_nhwc = out_nhwc[..., :c_out]
    return jnp.transpose(out_nhwc, (0, 3, 1, 2))                # back to NCHW


# --- module mirror ----------------------------------------------------------

def extra_repr(module, atts):
    return ", ".join(f"{att} = {getattr(module, att)}" for att in atts)


def initialize(key, shape, lim, dtype=jnp.float32):
    # Mirrors: nn.Parameter(t.rand(shape) * (2 * lim) - lim)  (uniform(-lim, lim))
    return jax.random.uniform(key, shape, dtype=dtype, minval=-lim, maxval=lim)


class Conv2d:
    """Mirror of the PyTorch Conv2d (bias=False); forward calls the Pallas kernel."""

    def __init__(self, in_channels: int, out_channels: int, kernel_size: int,
                 stride: int = 1, padding: int = 0, *, key=None,
                 dtype=jnp.float32):
        k = (in_channels * kernel_size ** 2) ** (-0.5)
        self.kernel_shape = (kernel_size, kernel_size)
        self.in_channels = in_channels
        self.out_channels = out_channels
        self.stride = stride
        self.padding = padding
        if key is None:
            key = jax.random.PRNGKey(0)
        self.weight = initialize(
            key, (out_channels, in_channels, kernel_size, kernel_size), k, dtype)

    def __call__(self, x):
        return conv2d(x, self.weight, self.stride, self.padding)

    def extra_repr(self) -> str:
        return extra_repr(self, ["in_channels", "out_channels", "kernel_shape",
                                 "stride", "padding"])


# --- reference + test -------------------------------------------------------

def _reference_conv2d(x, weight, stride, padding):
    return lax.conv_general_dilated(
        x, weight,
        window_strides=(stride, stride),
        padding=((padding, padding), (padding, padding)),
        dimension_numbers=("NCHW", "OIHW", "NCHW"),
        precision=lax.Precision.HIGHEST,
    )


if __name__ == "__main__":
    key = jax.random.PRNGKey(0)
    k_x, k_w1, k_w2 = jax.random.split(key, 3)

    x = jax.random.normal(k_x, (2, 4, 16, 16), dtype=jnp.float32)

    # Tolerance covers reduced-precision MXU passes for f32 matmuls on some
    # generations, but is far below any indexing/padding bug.
    ATOL = RTOL = 1e-2

    # padding > 0 path (in-kernel ring-zeroed VMEM padding + im2col reuse).
    conv = Conv2d(in_channels=4, out_channels=8, kernel_size=3, stride=1,
                  padding=1, key=k_w1)
    out = jax.block_until_ready(conv(x))
    ref = _reference_conv2d(x, conv.weight, stride=1, padding=1)
    assert out.shape == ref.shape, (out.shape, ref.shape)
    assert jnp.allclose(out, ref, atol=ATOL, rtol=RTOL), "conv2d mismatch (padding=1)"

    # padding == 0 path (no padded scratch) — the module's defaults.
    conv0 = Conv2d(in_channels=4, out_channels=8, kernel_size=3, key=k_w2)
    out0 = jax.block_until_ready(conv0(x))
    ref0 = _reference_conv2d(x, conv0.weight, stride=1, padding=0)
    assert out0.shape == ref0.shape, (out0.shape, ref0.shape)
    assert jnp.allclose(out0, ref0, atol=ATOL, rtol=RTOL), "conv2d mismatch (padding=0)"

    print("KERNEL_OK")
</pallas_src>

<mosaic_0001>
module attributes {stable_mosaic.version = 11 : i64} {
  func.func @_conv2d_kernel(%arg0: i32, %arg1: i32, %arg2: memref<1x16x16x4xf32, #tpu.memory_space<vmem>>, %arg3: memref<36x128xf32, #tpu.memory_space<vmem>>, %arg4: memref<1x16x16x128xf32, #tpu.memory_space<vmem>>, %arg5: memref<256x36xf32, #tpu.memory_space<vmem>>, %arg6: memref<18x18x4xf32, #tpu.memory_space<vmem>>) attributes {dimension_semantics = [#tpu.dimension_semantics<parallel>, #tpu.dimension_semantics<arbitrary>], iteration_bounds = array<i64: 2, 1>, scalar_prefetch = 0 : i64, scratch_operands = 2 : i64, tpu.core_type = #tpu.core_type<tc>, window_params = [{transform_indices = @transform_0, window_bounds = array<i64: 1, 16, 16, 4>}, {transform_indices = @transform_1, window_bounds = array<i64: 36, 128>}, {transform_indices = @transform_2, window_bounds = array<i64: 1, 16, 16, 128>}]} {
    %c0_i32 = arith.constant 0 : i32
    %0 = arith.cmpi eq, %arg1, %c0_i32 : i32
    %1 = arith.extui %0 : i1 to i32
    %c0_i32_0 = arith.constant 0 : i32
    %2 = arith.cmpi ne, %1, %c0_i32_0 : i32
    scf.if %2 {
      %cst_8 = arith.constant 0.000000e+00 : f32
      %8 = vector.broadcast %cst_8 : f32 to vector<1x18x4xf32>
      %c0_9 = arith.constant 0 : index
      %c0_10 = arith.constant 0 : index
      %c0_11 = arith.constant 0 : index
      %9 = vector.load %arg6[%c0_9, %c0_10, %c0_11] : memref<18x18x4xf32, #tpu.memory_space<vmem>>, vector<1x18x4xf32>
      tpu.vector_store %arg6[%c0_9, %c0_10, %c0_11], %8 {strides = array<i32>} : memref<18x18x4xf32, #tpu.memory_space<vmem>>, vector<1x18x4xf32>,
      %c17 = arith.constant 17 : index
      %c0_12 = arith.constant 0 : index
      %c0_13 = arith.constant 0 : index
      %10 = vector.load %arg6[%c17, %c0_12, %c0_13] : memref<18x18x4xf32, #tpu.memory_space<vmem>>, vector<1x18x4xf32>
      tpu.vector_store %arg6[%c17, %c0_12, %c0_13], %8 {strides = array<i32>} : memref<18x18x4xf32, #tpu.memory_space<vmem>>, vector<1x18x4xf32>,
      %cst_14 = arith.constant 0.000000e+00 : f32
      %11 = vector.broadcast %cst_14 : f32 to vector<16x1x4xf32>
      %c1 = arith.constant 1 : index
      %c0_15 = arith.constant 0 : index
      %c0_16 = arith.constant 0 : index
      %12 = vector.load %arg6[%c1, %c0_15, %c0_16] : memref<18x18x4xf32, #tpu.memory_space<vmem>>, vector<16x1x4xf32>
      tpu.vector_store %arg6[%c1, %c0_15, %c0_16], %11 {strides = array<i32>} : memref<18x18x4xf32, #tpu.memory_space<vmem>>, vector<16x1x4xf32>,
      %c1_17 = arith.constant 1 : index
      %c17_18 = arith.constant 17 : index
      %c0_19 = arith.constant 0 : index
      %13 = vector.load %arg6[%c1_17, %c17_18, %c0_19] : memref<18x18x4xf32, #tpu.memory_space<vmem>>, vector<16x1x4xf32>
      tpu.vector_store %arg6[%c1_17, %c17_18, %c0_19], %11 {strides = array<i32>} : memref<18x18x4xf32, #tpu.memory_space<vmem>>, vector<16x1x4xf32>,
      %c0_20 = arith.constant 0 : index
      %c0_21 = arith.constant 0 : index
      %c0_22 = arith.constant 0 : index
      %c0_23 = arith.constant 0 : index
      %14 = vector.load %arg2[%c0_20, %c0_21, %c0_22, %c0_23] : memref<1x16x16x4xf32, #tpu.memory_space<vmem>>, vector<1x16x16x4xf32>
      %15 = vector.shape_cast %14 : vector<1x16x16x4xf32> to vector<16x16x4xf32>
      %c1_24 = arith.constant 1 : index
      %c1_25 = arith.constant 1 : index
      %c0_26 = arith.constant 0 : index
      %16 = vector.load %arg6[%c1_24, %c1_25, %c0_26] : memref<18x18x4xf32, #tpu.memory_space<vmem>>, vector<16x16x4xf32>
      tpu.vector_store %arg6[%c1_24, %c1_25, %c0_26], %15 {strides = array<i32>} : memref<18x18x4xf32, #tpu.memory_space<vmem>>, vector<16x16x4xf32>,
      %c0_27 = arith.constant 0 : index
      %c0_28 = arith.constant 0 : index
      %c0_29 = arith.constant 0 : index
      %17 = vector.load %arg6[%c0_27, %c0_28, %c0_29] : memref<18x18x4xf32, #tpu.memory_space<vmem>>, vector<18x18x4xf32>
      %18 = vector.extract_strided_slice %17 {offsets = [0, 0, 0], sizes = [16, 16, 4], strides = [1, 1, 1]} : vector<18x18x4xf32> to vector<16x16x4xf32>
      %19 = vector.extract_strided_slice %17 {offsets = [0, 1, 0], sizes = [16, 16, 4], strides = [1, 1, 1]} : vector<18x18x4xf32> to vector<16x16x4xf32>
      %20 = vector.extract_strided_slice %17 {offsets = [0, 2, 0], sizes = [16, 16, 4], strides = [1, 1, 1]} : vector<18x18x4xf32> to vector<16x16x4xf32>
      %21 = vector.extract_strided_slice %17 {offsets = [1, 0, 0], sizes = [16, 16, 4], strides = [1, 1, 1]} : vector<18x18x4xf32> to vector<16x16x4xf32>
      %22 = vector.extract_strided_slice %17 {offsets = [1, 1, 0], sizes = [16, 16, 4], strides = [1, 1, 1]} : vector<18x18x4xf32> to vector<16x16x4xf32>
      %23 = vector.extract_strided_slice %17 {offsets = [1, 2, 0], sizes = [16, 16, 4], strides = [1, 1, 1]} : vector<18x18x4xf32> to vector<16x16x4xf32>
      %24 = vector.extract_strided_slice %17 {offsets = [2, 0, 0], sizes = [16, 16, 4], strides = [1, 1, 1]} : vector<18x18x4xf32> to vector<16x16x4xf32>
      %25 = vector.extract_strided_slice %17 {offsets = [2, 1, 0], sizes = [16, 16, 4], strides = [1, 1, 1]} : vector<18x18x4xf32> to vector<16x16x4xf32>
      %26 = vector.extract_strided_slice %17 {offsets = [2, 2, 0], sizes = [16, 16, 4], strides = [1, 1, 1]} : vector<18x18x4xf32> to vector<16x16x4xf32>
      %27 = tpu.concatenate %18, %19, %20, %21, %22, %23, %24, %25, %26 in 2 : vector<16x16x4xf32>, vector<16x16x4xf32>, vector<16x16x4xf32>, vector<16x16x4xf32>, vector<16x16x4xf32>, vector<16x16x4xf32>, vector<16x16x4xf32>, vector<16x16x4xf32>, vector<16x16x4xf32> -> vector<16x16x36xf32>
      %28 = vector.shape_cast %27 : vector<16x16x36xf32> to vector<256x36xf32>
      %c0_30 = arith.constant 0 : index
      %c0_31 = arith.constant 0 : index
      %29 = vector.load %arg5[%c0_30, %c0_31] : memref<256x36xf32, #tpu.memory_space<vmem>>, vector<256x36xf32>
      tpu.vector_store %arg5[%c0_30, %c0_31], %28 {strides = array<i32>} : memref<256x36xf32, #tpu.memory_space<vmem>>, vector<256x36xf32>,
    } else {
    }
    %c0 = arith.constant 0 : index
    %c0_1 = arith.constant 0 : index
    %3 = vector.load %arg5[%c0, %c0_1] : memref<256x36xf32, #tpu.memory_space<vmem>>, vector<256x36xf32>
    %c0_2 = arith.constant 0 : index
    %c0_3 = arith.constant 0 : index
    %4 = vector.load %arg3[%c0_2, %c0_3] : memref<36x128xf32, #tpu.memory_space<vmem>>, vector<36x128xf32>
    %cst = arith.constant dense<0.000000e+00> : vector<256x128xf32>
    %5 = tpu.matmul %3, %4, %cst {dimension_numbers = #tpu.dot_dimension_numbers<[1], [0], [0], [1], [0, 0, 1, 1], [], []>} : vector<256x36xf32>, vector<36x128xf32>, vector<256x128xf32> -> vector<256x128xf32>
    %6 = vector.shape_cast %5 : vector<256x128xf32> to vector<1x16x16x128xf32>
    %c0_4 = arith.constant 0 : index
    %c0_5 = arith.constant 0 : index
    %c0_6 = arith.constant 0 : index
    %c0_7 = arith.constant 0 : index
    %7 = vector.load %arg4[%c0_4, %c0_5, %c0_6, %c0_7] : memref<1x16x16x128xf32, #tpu.memory_space<vmem>>, vector<1x16x16x128xf32>
    tpu.vector_store %arg4[%c0_4, %c0_5, %c0_6, %c0_7], %6 {strides = array<i32>} : memref<1x16x16x128xf32, #tpu.memory_space<vmem>>, vector<1x16x16x128xf32>,
    return
  }
  func.func @transform_0(%arg0: i32, %arg1: i32) -> (i32, i32, i32, i32) {
    %c0_i32 = arith.constant 0 : i32
    %c0_i32_0 = arith.constant 0 : i32
    %c0_i32_1 = arith.constant 0 : i32
    %c0_i32_2 = arith.constant 0 : i32
    return %arg0, %c0_i32, %c0_i32_0, %c0_i32_1 : i32, i32, i32, i32
  }
  func.func @transform_1(%arg0: i32, %arg1: i32) -> (i32, i32) {
    %c0_i32 = arith.constant 0 : i32
    %c0_i32_0 = arith.constant 0 : i32
    return %c0_i32, %arg1 : i32, i32
  }
  func.func @transform_2(%arg0: i32, %arg1: i32) -> (i32, i32, i32, i32) {
    %c0_i32 = arith.constant 0 : i32
    %c0_i32_0 = arith.constant 0 : i32
    %c0_i32_1 = arith.constant 0 : i32
    return %arg0, %c0_i32, %c0_i32_0, %arg1 : i32, i32, i32, i32
  }
}

</mosaic_0001>

<llo_original>
// kernel: tpu_custom_call.1
$region0: #{tpu_custom_call.1}
  #allocation0 [shape = 'u32[]', space=smem, size = 0x4, offset = 0x4, fixed_abs, tag = 'smem constant byte address 0x4 - core index']
  #allocation1 [shape = 'u32[72,128]{1,0:T(1,128)}', space=vmem, size = 0x9000, scoped, tag = 'internal scratch']
  #allocation2 [shape = 'f32[256,36]{1,0:T(8,128)}', space=vmem, size = 0x20000, scoped, tag = 'scratch operand']
  #allocation3 [shape = 'f32[18,18,4]{2,1,0:T(8,128)}', space=vmem, size = 0x36000, scoped, tag = 'scratch operand']
  %s0 = inlined_call_operand.vmem [shape: f32[2,16,16,4], index: 0, kind: input, shape index: {}]
  %s1 = inlined_call_operand.vmem [shape: f32[36,128], index: 1, kind: input, shape index: {}]
  %s2 = inlined_call_operand.hbm [shape: f32[2,16,16,128], index: 2, kind: output, shape index: {}]
  %s3 = sld [smem:[#allocation0]]
  $region45: #{tpu_custom_call.1} parent=0
    _
  %s5 = ssub.s32 1, %s3
  %s6 = scalar_select 0, %s5, %s3
  $region1: #{tpu_custom_call.1} parent=0
    #allocation4 [shape = 'u8[262144]{0}', space=vmem, size = 0x40000, scoped, tag = 'output window, operand 0']
    #allocation5 [shape = 's32[2]{0}', space=sflag, size = 0x8, scoped, tag = 'scoped memory for tpu_custom_call.1']
    %7 = vsyncpa [#allocation5], 0
    %s8 = scalar_lea.sflag [#allocation5], 1
    %9 = vsyncpa %s8, 0
    loop: start=0, step=1, limit=4
    $region2: #{tpu_custom_call.1} parent=1 // loop_pre_header
      _
    $region3: #{tpu_custom_call.1} parent=1 // loop_header
      %s11 = sphi 0, %s15
      %p12 = scmp.ge.s32.totalorder %s11, 4
      %s18 = sphi 0, %s30
      %s19 = sphi 0, %s26
      %s20 = sphi 0, %s18
      %s21 = sphi 0, %s19
      %s22 = sphi 0, %s20
      %s23 = sphi 0, %s21
      %s33 = sphi 0, %s35
      %s36 = sphi 0, %s33
      %s37 = sphi 0, %s36
      %s53 = sphi 0, %s37
      %s59 = sphi 0, %s61
      %s62 = sphi 0, %s59
      %s63 = sphi 0, %s62
      %s79 = sphi 0, %s63
      %s87 = sphi 0, %s89
      %s90 = sphi 0, %s87
      %s91 = sphi 0, %s90
      %s107 = sphi 0, %s91
    $region4: #{tpu_custom_call.1} parent=1 // loop_header_branch
      %14 = sbr.rel (%p12) target = $region8
    $region5: #{tpu_custom_call.1} parent=1 // loop_body
      %s16 = ssub.s32 %s11, 1
      %s17 = ssub.s32 %s11, 2
      %s24 = sadd.s32 1, %s19
      %p25 = scmp.ge.s32.totalorder %s24, 1
      %s26 = scalar_select %p25, 0, %s24
      %s27 = sadd.s32 1, %s18
      %s28 = scalar_select %p25, %s27, %s18
      %p29 = scmp.ge.s32.totalorder %s28, 2
      %s30 = scalar_select %p29, 0, %s28
      %s31 = ssub.s32 %s18, %s30
      %p32 = scmp.eq.s32.totalorder %s31, 0
      %s34 = sadd.s32 %s33, 1
      %s35 = scalar_select %p32, %s33, %s34
      %p38 = pneg %p32
      %p39 = scmp.eq.s32.totalorder %s11, 1
      %p40 = por %p38, %p39
      %p41 = scmp.ne.s32.totalorder %s33, %s36
      %p42 = scmp.eq.s32.totalorder %s11, 0
      %p43 = por %p41, %p42
      %p44 = scmp.ne.s32.totalorder %s33, %s36
      %p45 = scmp.eq.s32.totalorder %s16, 1
      %p46 = por %p44, %p45
      %p47 = scmp.ne.s32.totalorder %s36, %s37
      %p48 = scmp.eq.s32.totalorder %s16, 0
      %p49 = por %p47, %p48
      %p50 = scmp.ne.s32.totalorder %s36, %s37
      %p51 = scmp.eq.s32.totalorder %s17, 1
      %p52 = por %p50, %p51
      %p54 = scmp.ne.s32.totalorder %s37, %s53
      %p55 = scmp.eq.s32.totalorder %s17, 0
      %p56 = por %p54, %p55
      %s57 = ssub.s32 %s19, %s26
      %p58 = scmp.eq.s32.totalorder %s57, 0
      %s60 = sadd.s32 %s59, 1
      %s61 = scalar_select %p58, %s59, %s60
      %p64 = pneg %p58
      %p65 = scmp.eq.s32.totalorder %s11, 1
      %p66 = por %p64, %p65
      %p67 = scmp.ne.s32.totalorder %s59, %s62
      %p68 = scmp.eq.s32.totalorder %s11, 0
      %p69 = por %p67, %p68
      %p70 = scmp.ne.s32.totalorder %s59, %s62
      %p71 = scmp.eq.s32.totalorder %s16, 1
      %p72 = por %p70, %p71
      %p73 = scmp.ne.s32.totalorder %s62, %s63
      %p74 = scmp.eq.s32.totalorder %s16, 0
      %p75 = por %p73, %p74
      %p76 = scmp.ne.s32.totalorder %s62, %s63
      %p77 = scmp.eq.s32.totalorder %s17, 1
      %p78 = por %p76, %p77
      %p80 = scmp.ne.s32.totalorder %s63, %s79
      %p81 = scmp.eq.s32.totalorder %s17, 0
      %p82 = por %p80, %p81
      %s83 = ssub.s32 %s18, %s30
      %s84 = ssub.s32 %s19, %s26
      %s85 = sor.u32 %s83, %s84
      %p86 = scmp.eq.s32.totalorder %s85, 0
      %s88 = sadd.s32 %s87, 1
      %s89 = scalar_select %p86, %s87, %s88
      %p92 = pneg %p86
      %p93 = scmp.eq.s32.totalorder %s11, 1
      %p94 = por %p92, %p93
      %p95 = scmp.ne.s32.totalorder %s87, %s90
      %p96 = scmp.eq.s32.totalorder %s11, 0
      %p97 = por %p95, %p96
      %p98 = scmp.ne.s32.totalorder %s87, %s90
      %p99 = scmp.eq.s32.totalorder %s16, 1
      %p100 = por %p98, %p99
      %p101 = scmp.ne.s32.totalorder %s90, %s91
      %p102 = scmp.eq.s32.totalorder %s16, 0
      %p103 = por %p101, %p102
      %p104 = scmp.ne.s32.totalorder %s90, %s91
      %p105 = scmp.eq.s32.totalorder %s17, 1
      %p106 = por %p104, %p105
      %p108 = scmp.ne.s32.totalorder %s91, %s107
      %p109 = scmp.eq.s32.totalorder %s17, 0
      %p110 = por %p108, %p109
      %p111 = scmp.le.s32.totalorder 1, %s11
      %p112 = scmp.lt.s32.totalorder %s11, 3
      %p113 = pnand %p111, %p112
      %p114 = pneg %p113
      // Predicated region
      $region9: #{tpu_custom_call.1} parent=5 // pred_check
        _
      $region10: #{tpu_custom_call.1} parent=5 // pred_check_branch
        %116 = sbr.rel (%p113) target = $region12
      $region11: #{tpu_custom_call.1} parent=5 // pred_region
        %s117 = ssub.s32 %s11, 1
        // Predicated region
        $region13: #{tpu_custom_call.1} parent=11 // pred_check
          %p118 = pneg %p75
        $region14: #{tpu_custom_call.1} parent=11 // pred_check_branch
          %120 = sbr.rel (%p118) target = $region16
        $region15: #{tpu_custom_call.1} parent=11 // pred_region
          %p121 = scmp.lt.s32.totalorder %s21, 0
          %s122 = scalar_select %p121, %s21, 0
          %s123 = smul.addr %s122, 8
          %s124 = scalar_lea.vmem %s1, %s123
        $region16: #{tpu_custom_call.1} parent=11 // pred_fallthru
          _
      $region12: #{tpu_custom_call.1} parent=5 // pred_fallthru
        _
      %p125 = scmp.lt.s32.totalorder %s11, 2
      // Predicated region
      $region17: #{tpu_custom_call.1} parent=5 // pred_check
        %p126 = pneg %p125
      $region18: #{tpu_custom_call.1} parent=5 // pred_check_branch
        %128 = sbr.rel (%p126) target = $region20
      $region19: #{tpu_custom_call.1} parent=5 // pred_region
        // Predicated region
        $region21: #{tpu_custom_call.1} parent=19 // pred_check
          %p129 = pneg %p43
        $region22: #{tpu_custom_call.1} parent=19 // pred_check_branch
          %131 = sbr.rel (%p129) target = $region24
        $region23: #{tpu_custom_call.1} parent=19 // pred_region
          %p132 = scmp.lt.s32.totalorder %s18, 1
          %s133 = scalar_select %p132, %s18, 1
          %s134 = smul.addr %s133, 32
          %s135 = smul.addr %s134, 8
          %s136 = scalar_lea.vmem %s0, %s135
        $region24: #{tpu_custom_call.1} parent=19 // pred_fallthru
          _
      $region20: #{tpu_custom_call.1} parent=5 // pred_fallthru
        _
      %p137 = scmp.le.s32.totalorder 1, %s11
      %p138 = scmp.lt.s32.totalorder %s11, 3
      %p139 = pnand %p137, %p138
      %p140 = pneg %p139
      // Predicated region
      $region25: #{tpu_custom_call.1} parent=5 // pred_check
        _
      $region26: #{tpu_custom_call.1} parent=5 // pred_check_branch
        %142 = sbr.rel (%p139) target = $region28
      $region27: #{tpu_custom_call.1} parent=5 // pred_region
        %s143 = ssub.s32 %s11, 1
        %p144 = scmp.lt.s32.totalorder %s20, 1
        %s145 = scalar_select %p144, %s20, 1
        %s146 = smul.addr %s145, 32
        %s147 = smul.addr %s146, 8
        %s148 = scalar_lea.vmem %s0, %s147
        %p149 = pneg %p49
        %p150 = pneg %p46
        %p151 = scmp.lt.s32.totalorder %s21, 0
        %s152 = scalar_select %p151, %s21, 0
        %s153 = smul.addr %s152, 8
        %s154 = scalar_lea.vmem %s1, %s153
        %p155 = pneg %p75
        %p156 = pneg %p72
        %p157 = pneg %p103
        %p158 = pneg %p100
        %s159 = sand.u32 %s90, 1
        %s160 = scalar_lea.sflag [#allocation5], %s159
        %s161 = sand.u32 %s90, 1
        %s162 = smul.addr %s161, 256
        %s163 = scalar_lea.vmem [#allocation4], %s162
        %p164 = scmp.lt.s32.totalorder %s20, 1
        %s165 = scalar_select %p164, %s20, 1
        %s166 = smul.addr %s165, 32
        %s167 = smul.addr %s166, 8
        %s168 = scalar_lea.vmem %s0, %s167
        %p169 = scmp.lt.s32.totalorder %s21, 0
        %s170 = scalar_select %p169, %s21, 0
        %s171 = smul.addr %s170, 8
        %s172 = scalar_lea.vmem %s1, %s171
        %p173 = scmp.eq.s32.totalorder %s21, 0
        // Predicated region
        $region29: #{tpu_custom_call.1} parent=27 // pred_check
          %p174 = pneg %p173
        $region30: #{tpu_custom_call.1} parent=27 // pred_check_branch
          %176 = sbr.rel (%p174) target = $region32
        $region31: #{tpu_custom_call.1} parent=27 // pred_region
          %vm177 = vcmask 31744
          %178 = vst.msk [vmem:[#allocation3] sm:$0xff] %vm177, 0.0
          %179 = vst.msk [vmem:[#allocation3 + $0x8] sm:$0xff] %vm177, 0.0
          %vm180 = vcmask 25600
          %181 = vst.msk [vmem:[#allocation3 + $0x10] sm:$0x3] %vm180, 0.0
          %s182 = scalar_lea.vmem [#allocation3], 408
          %183 = vst.msk [vmem:[%s182] sm:$0xff] %vm177, 0.0
          %184 = vst.msk [vmem:[%s182 + $0x8] sm:$0xff] %vm177, 0.0
          %185 = vst.msk [vmem:[%s182 + $0x10] sm:$0x3] %vm180, 0.0
          %s186 = scalar_lea.vmem [#allocation3], 24
          %vm187 = vcmask 24576
          %188 = vst.msk [vmem:[%s186] sm:$0x1] %vm187, 0.0
          %189 = vst.msk [vmem:[%s186 + $0x18] sm:$0x1] %vm187, 0.0
          %190 = vst.msk [vmem:[%s186 + $0x30] sm:$0x1] %vm187, 0.0
          %191 = vst.msk [vmem:[%s186 + $0x48] sm:$0x1] %vm187, 0.0
          %192 = vst.msk [vmem:[%s186 + $0x60] sm:$0x1] %vm187, 0.0
          %193 = vst.msk [vmem:[%s186 + $0x78] sm:$0x1] %vm187, 0.0
          %194 = vst.msk [vmem:[%s186 + $0x90] sm:$0x1] %vm187, 0.0
          %195 = vst.msk [vmem:[%s186 + $0xa8] sm:$0x1] %vm187, 0.0
          %196 = vst.msk [vmem:[%s186 + $0xc0] sm:$0x1] %vm187, 0.0
          %197 = vst.msk [vmem:[%s186 + $0xd8] sm:$0x1] %vm187, 0.0
          %198 = vst.msk [vmem:[%s186 + $0xf0] sm:$0x1] %vm187, 0.0
          %199 = vst.msk [vmem:[%s186 + $0x108] sm:$0x1] %vm187, 0.0
          %200 = vst.msk [vmem:[%s186 + $0x120] sm:$0x1] %vm187, 0.0
          %201 = vst.msk [vmem:[%s186 + $0x138] sm:$0x1] %vm187, 0.0
          %202 = vst.msk [vmem:[%s186 + $0x150] sm:$0x1] %vm187, 0.0
          %203 = vst.msk [vmem:[%s186 + $0x168] sm:$0x1] %vm187, 0.0
          %204 = vst.msk [vmem:[%s186 + $0x11] sm:$0x1] %vm187, 0.0
          %205 = vst.msk [vmem:[%s186 + $0x29] sm:$0x1] %vm187, 0.0
          %206 = vst.msk [vmem:[%s186 + $0x41] sm:$0x1] %vm187, 0.0
          %207 = vst.msk [vmem:[%s186 + $0x59] sm:$0x1] %vm187, 0.0
          %208 = vst.msk [vmem:[%s186 + $0x71] sm:$0x1] %vm187, 0.0
          %209 = vst.msk [vmem:[%s186 + $0x89] sm:$0x1] %vm187, 0.0
          %210 = vst.msk [vmem:[%s186 + $0xa1] sm:$0x1] %vm187, 0.0
          %211 = vst.msk [vmem:[%s186 + $0xb9] sm:$0x1] %vm187, 0.0
          %212 = vst.msk [vmem:[%s186 + $0xd1] sm:$0x1] %vm187, 0.0
          %213 = vst.msk [vmem:[%s186 + $0xe9] sm:$0x1] %vm187, 0.0
          %214 = vst.msk [vmem:[%s186 + $0x101] sm:$0x1] %vm187, 0.0
          %215 = vst.msk [vmem:[%s186 + $0x119] sm:$0x1] %vm187, 0.0
          %216 = vst.msk [vmem:[%s186 + $0x131] sm:$0x1] %vm187, 0.0
          %217 = vst.msk [vmem:[%s186 + $0x149] sm:$0x1] %vm187, 0.0
          %218 = vst.msk [vmem:[%s186 + $0x161] sm:$0x1] %vm187, 0.0
          %219 = vst.msk [vmem:[%s186 + $0x179] sm:$0x1] %vm187, 0.0
          %v220 = vld [vmem:[%s168] sm:$0xff]
          %v221 = vld [vmem:[%s168 + $0x8] sm:$0xff]
          %v222 = vld [vmem:[%s168 + $0x10] sm:$0xff]
          %v223 = vld [vmem:[%s168 + $0x18] sm:$0xff]
          %v224 = vld [vmem:[%s168 + $0x20] sm:$0xff]
          %v225 = vld [vmem:[%s168 + $0x28] sm:$0xff]
          %v226 = vld [vmem:[%s168 + $0x30] sm:$0xff]
          %v227 = vld [vmem:[%s168 + $0x38] sm:$0xff]
          %v228 = vld [vmem:[%s168 + $0x40] sm:$0xff]
          %v229 = vld [vmem:[%s168 + $0x48] sm:$0xff]
          %v230 = vld [vmem:[%s168 + $0x50] sm:$0xff]
          %v231 = vld [vmem:[%s168 + $0x58] sm:$0xff]
          %v232 = vld [vmem:[%s168 + $0x60] sm:$0xff]
          %v233 = vld [vmem:[%s168 + $0x68] sm:$0xff]
          %v234 = vld [vmem:[%s168 + $0x70] sm:$0xff]
          %v235 = vld [vmem:[%s168 + $0x78] sm:$0xff]
          %v236 = vld [vmem:[%s168 + $0x80] sm:$0xff]
          %v237 = vld [vmem:[%s168 + $0x88] sm:$0xff]
          %v238 = vld [vmem:[%s168 + $0x90] sm:$0xff]
          %v239 = vld [vmem:[%s168 + $0x98] sm:$0xff]
          %v240 = vld [vmem:[%s168 + $0xa0] sm:$0xff]
          %v241 = vld [vmem:[%s168 + $0xa8] sm:$0xff]
          %v242 = vld [vmem:[%s168 + $0xb0] sm:$0xff]
          %v243 = vld [vmem:[%s168 + $0xb8] sm:$0xff]
          %v244 = vld [vmem:[%s168 + $0xc0] sm:$0xff]
          %v245 = vld [vmem:[%s168 + $0xc8] sm:$0xff]
          %v246 = vld [vmem:[%s168 + $0xd0] sm:$0xff]
          %v247 = vld [vmem:[%s168 + $0xd8] sm:$0xff]
          %v248 = vld [vmem:[%s168 + $0xe0] sm:$0xff]
          %v249 = vld [vmem:[%s168 + $0xe8] sm:$0xff]
          %v250 = vld [vmem:[%s168 + $0xf0] sm:$0xff]
          %v251 = vld [vmem:[%s168 + $0xf8] sm:$0xff]
          %252 = vst.msk [vmem:[%s186 + $0x1] sm:$0xff] %vm177, %v220
          %253 = vst.msk [vmem:[%s186 + $0x9] sm:$0xff] %vm177, %v221
          %254 = vst.msk [vmem:[%s186 + $0x19] sm:$0xff] %vm177, %v222
          %255 = vst.msk [vmem:[%s186 + $0x21] sm:$0xff] %vm177, %v223
          %256 = vst.msk [vmem:[%s186 + $0x31] sm:$0xff] %vm177, %v224
          %257 = vst.msk [vmem:[%s186 + $0x39] sm:$0xff] %vm177, %v225
          %258 = vst.msk [vmem:[%s186 + $0x49] sm:$0xff] %vm177, %v226
          %259 = vst.msk [vmem:[%s186 + $0x51] sm:$0xff] %vm177, %v227
          %260 = vst.msk [vmem:[%s186 + $0x61] sm:$0xff] %vm177, %v228
          %261 = vst.msk [vmem:[%s186 + $0x69] sm:$0xff] %vm177, %v229
          %262 = vst.msk [vmem:[%s186 + $0x79] sm:$0xff] %vm177, %v230
          %263 = vst.msk [vmem:[%s186 + $0x81] sm:$0xff] %vm177, %v231
          %264 = vst.msk [vmem:[%s186 + $0x91] sm:$0xff] %vm177, %v232
          %265 = vst.msk [vmem:[%s186 + $0x99] sm:$0xff] %vm177, %v233
          %266 = vst.msk [vmem:[%s186 + $0xa9] sm:$0xff] %vm177, %v234
          %267 = vst.msk [vmem:[%s186 + $0xb1] sm:$0xff] %vm177, %v235
          %268 = vst.msk [vmem:[%s186 + $0xc1] sm:$0xff] %vm177, %v236
          %269 = vst.msk [vmem:[%s186 + $0xc9] sm:$0xff] %vm177, %v237
          %270 = vst.msk [vmem:[%s186 + $0xd9] sm:$0xff] %vm177, %v238
          %271 = vst.msk [vmem:[%s186 + $0xe1] sm:$0xff] %vm177, %v239
          %272 = vst.msk [vmem:[%s186 + $0xf1] sm:$0xff] %vm177, %v240
          %273 = vst.msk [vmem:[%s186 + $0xf9] sm:$0xff] %vm177, %v241
          %274 = vst.msk [vmem:[%s186 + $0x109] sm:$0xff] %vm177, %v242
          %275 = vst.msk [vmem:[%s186 + $0x111] sm:$0xff] %vm177, %v243
          %276 = vst.msk [vmem:[%s186 + $0x121] sm:$0xff] %vm177, %v244
          %277 = vst.msk [vmem:[%s186 + $0x129] sm:$0xff] %vm177, %v245
          %278 = vst.msk [vmem:[%s186 + $0x139] sm:$0xff] %vm177, %v246
          %279 = vst.msk [vmem:[%s186 + $0x141] sm:$0xff] %vm177, %v247
          %280 = vst.msk [vmem:[%s186 + $0x151] sm:$0xff] %vm177, %v248
          %281 = vst.msk [vmem:[%s186 + $0x159] sm:$0xff] %vm177, %v249
          %282 = vst.msk [vmem:[%s186 + $0x169] sm:$0xff] %vm177, %v250
          %283 = vst.msk [vmem:[%s186 + $0x171] sm:$0xff] %vm177, %v251
          %v284 = vld [vmem:[#allocation3] sm:$0xff]
          %v285 = vld [vmem:[#allocation3 + $0x8] sm:$0xff]
          %v286 = vld [vmem:[#allocation3 + $0x10] sm:$0x3]
          %v287 = vld [vmem:[#allocation3 + $0x18] sm:$0xff]
          %v288 = vld [vmem:[#allocation3 + $0x20] sm:$0xff]
          %v289 = vld [vmem:[#allocation3 + $0x28] sm:$0x3]
          %v290 = vld [vmem:[#allocation3 + $0x30] sm:$0xff]
          %v291 = vld [vmem:[#allocation3 + $0x38] sm:$0xff]
          %v292 = vld [vmem:[#allocation3 + $0x40] sm:$0x3]
          %v293 = vld [vmem:[#allocation3 + $0x48] sm:$0xff]
          %v294 = vld [vmem:[#allocation3 + $0x50] sm:$0xff]
          %v295 = vld [vmem:[#allocation3 + $0x58] sm:$0x3]
          %v296 = vld [vmem:[#allocation3 + $0x60] sm:$0xff]
          %v297 = vld [vmem:[#allocation3 + $0x68] sm:$0xff]
          %v298 = vld [vmem:[#allocation3 + $0x70] sm:$0x3]
          %v299 = vld [vmem:[#allocation3 + $0x78] sm:$0xff]
          %v300 = vld [vmem:[#allocation3 + $0x80] sm:$0xff]
          %v301 = vld [vmem:[#allocation3 + $0x88] sm:$0x3]
          %v302 = vld [vmem:[#allocation3 + $0x90] sm:$0xff]
          %v303 = vld [vmem:[#allocation3 + $0x98] sm:$0xff]
          %v304 = vld [vmem:[#allocation3 + $0xa0] sm:$0x3]
          %v305 = vld [vmem:[#allocation3 + $0xa8] sm:$0xff]
          %v306 = vld [vmem:[#allocation3 + $0xb0] sm:$0xff]
          %v307 = vld [vmem:[#allocation3 + $0xb8] sm:$0x3]
          %v308 = vld [vmem:[#allocation3 + $0xc0] sm:$0xff]
          %v309 = vld [vmem:[#allocation3 + $0xc8] sm:$0xff]
          %v310 = vld [vmem:[#allocation3 + $0xd0] sm:$0x3]
          %v311 = vld [vmem:[#allocation3 + $0xd8] sm:$0xff]
          %v312 = vld [vmem:[#allocation3 + $0xe0] sm:$0xff]
          %v313 = vld [vmem:[#allocation3 + $0xe8] sm:$0x3]
          %v314 = vld [vmem:[#allocation3 + $0xf0] sm:$0xff]
          %v315 = vld [vmem:[#allocation3 + $0xf8] sm:$0xff]
          %v316 = vld [vmem:[#allocation3 + $0x100] sm:$0x3]
          %v317 = vld [vmem:[#allocation3 + $0x108] sm:$0xff]
          %v318 = vld [vmem:[#allocation3 + $0x110] sm:$0xff]
          %v319 = vld [vmem:[#allocation3 + $0x118] sm:$0x3]
          %v320 = vld [vmem:[#allocation3 + $0x120] sm:$0xff]
          %v321 = vld [vmem:[#allocation3 + $0x128] sm:$0xff]
          %v322 = vld [vmem:[#allocation3 + $0x130] sm:$0x3]
          %v323 = vld [vmem:[#allocation3 + $0x138] sm:$0xff]
          %v324 = vld [vmem:[#allocation3 + $0x140] sm:$0xff]
          %v325 = vld [vmem:[#allocation3 + $0x148] sm:$0x3]
          %v326 = vld [vmem:[#allocation3 + $0x150] sm:$0xff]
          %v327 = vld [vmem:[#allocation3 + $0x158] sm:$0xff]
          %v328 = vld [vmem:[#allocation3 + $0x160] sm:$0x3]
          %v329 = vld [vmem:[#allocation3 + $0x168] sm:$0xff]
          %v330 = vld [vmem:[#allocation3 + $0x170] sm:$0xff]
          %v331 = vld [vmem:[#allocation3 + $0x178] sm:$0x3]
          %v332 = vld [vmem:[#allocation3 + $0x180] sm:$0xff]
          %v333 = vld [vmem:[#allocation3 + $0x188] sm:$0xff]
          %v334 = vld [vmem:[#allocation3 + $0x190] sm:$0x3]
          %v335 = vld [vmem:[#allocation3 + $0x198] sm:$0xff]
          %v336 = vld [vmem:[#allocation3 + $0x1a0] sm:$0xff]
          %v337 = vld [vmem:[#allocation3 + $0x1a8] sm:$0x3]
          %vm386 = vcmask 1046528
          %v387 = vrot.slane %v284, 1
          %v388 = vrot.slane %v285, 1
          %v389 = vsel %vm386, %v387, %v388
          %v390 = vrot.slane %v286, 1
          %v391 = vsel %vm386, %v388, %v390
          %v392 = vrot.slane %v287, 1
          %v393 = vrot.slane %v288, 1
          %v394 = vsel %vm386, %v392, %v393
          %v395 = vrot.slane %v289, 1
          %v396 = vsel %vm386, %v393, %v395
          %v397 = vrot.slane %v290, 1
          %v398 = vrot.slane %v291, 1
          %v399 = vsel %vm386, %v397, %v398
          %v400 = vrot.slane %v292, 1
          %v401 = vsel %vm386, %v398, %v400
          %v402 = vrot.slane %v293, 1
          %v403 = vrot.slane %v294, 1
          %v404 = vsel %vm386, %v402, %v403
          %v405 = vrot.slane %v295, 1
          %v406 = vsel %vm386, %v403, %v405
          %v407 = vrot.slane %v296, 1
          %v408 = vrot.slane %v297, 1
          %v409 = vsel %vm386, %v407, %v408
          %v410 = vrot.slane %v298, 1
          %v411 = vsel %vm386, %v408, %v410
          %v412 = vrot.slane %v299, 1
          %v413 = vrot.slane %v300, 1
          %v414 = vsel %vm386, %v412, %v413
          %v415 = vrot.slane %v301, 1
          %v416 = vsel %vm386, %v413, %v415
          %v417 = vrot.slane %v302, 1
          %v418 = vrot.slane %v303, 1
          %v419 = vsel %vm386, %v417, %v418
          %v420 = vrot.slane %v304, 1
          %v421 = vsel %vm386, %v418, %v420
          %v422 = vrot.slane %v305, 1
          %v423 = vrot.slane %v306, 1
          %v424 = vsel %vm386, %v422, %v423
          %v425 = vrot.slane %v307, 1
          %v426 = vsel %vm386, %v423, %v425
          %v427 = vrot.slane %v308, 1
          %v428 = vrot.slane %v309, 1
          %v429 = vsel %vm386, %v427, %v428
          %v430 = vrot.slane %v310, 1
          %v431 = vsel %vm386, %v428, %v430
          %v432 = vrot.slane %v311, 1
          %v433 = vrot.slane %v312, 1
          %v434 = vsel %vm386, %v432, %v433
          %v435 = vrot.slane %v313, 1
          %v436 = vsel %vm386, %v433, %v435
          %v437 = vrot.slane %v314, 1
          %v438 = vrot.slane %v315, 1
          %v439 = vsel %vm386, %v437, %v438
          %v440 = vrot.slane %v316, 1
          %v441 = vsel %vm386, %v438, %v440
          %v442 = vrot.slane %v317, 1
          %v443 = vrot.slane %v318, 1
          %v444 = vsel %vm386, %v442, %v443
          %v445 = vrot.slane %v319, 1
          %v446 = vsel %vm386, %v443, %v445
          %v447 = vrot.slane %v320, 1
          %v448 = vrot.slane %v321, 1
          %v449 = vsel %vm386, %v447, %v448
          %v450 = vrot.slane %v322, 1
          %v451 = vsel %vm386, %v448, %v450
          %v452 = vrot.slane %v323, 1
          %v453 = vrot.slane %v324, 1
          %v454 = vsel %vm386, %v452, %v453
          %v455 = vrot.slane %v325, 1
          %v456 = vsel %vm386, %v453, %v455
          %v457 = vrot.slane %v326, 1
          %v458 = vrot.slane %v327, 1
          %v459 = vsel %vm386, %v457, %v458
          %v460 = vrot.slane %v328, 1
          %v461 = vsel %vm386, %v458, %v460
          %v462 = vrot.slane %v329, 1
          %v463 = vrot.slane %v330, 1
          %v464 = vsel %vm386, %v462, %v463
          %v465 = vrot.slane %v331, 1
          %v466 = vsel %vm386, %v463, %v465
          %467 = vrot.lane.b32.xlu0 %v389, 4
          %v468 = vpop.permute.xlu0 %467
          %469 = vrot.lane.b32.xlu0 %v391, 4
          %v470 = vpop.permute.xlu0 %469
          %471 = vrot.lane.b32.xlu0 %v394, 4
          %v472 = vpop.permute.xlu0 %471
          %473 = vrot.lane.b32.xlu0 %v396, 4
          %v474 = vpop.permute.xlu0 %473
          %475 = vrot.lane.b32.xlu0 %v399, 4
          %v476 = vpop.permute.xlu0 %475
          %477 = vrot.lane.b32.xlu0 %v401, 4
          %v478 = vpop.permute.xlu0 %477
          %479 = vrot.lane.b32.xlu0 %v404, 4
          %v480 = vpop.permute.xlu0 %479
          %481 = vrot.lane.b32.xlu0 %v406, 4
          %v482 = vpop.permute.xlu0 %481
          %483 = vrot.lane.b32.xlu0 %v409, 4
          %v484 = vpop.permute.xlu0 %483
          %485 = vrot.lane.b32.xlu0 %v411, 4
          %v486 = vpop.permute.xlu0 %485
          %487 = vrot.lane.b32.xlu0 %v414, 4
          %v488 = vpop.permute.xlu0 %487
          %489 = vrot.lane.b32.xlu0 %v416, 4
          %v490 = vpop.permute.xlu0 %489
          %491 = vrot.lane.b32.xlu0 %v419, 4
          %v492 = vpop.permute.xlu0 %491
          %493 = vrot.lane.b32.xlu0 %v421, 4
          %v494 = vpop.permute.xlu0 %493
          %495 = vrot.lane.b32.xlu0 %v424, 4
          %v496 = vpop.permute.xlu0 %495
          %497 = vrot.lane.b32.xlu0 %v426, 4
          %v498 = vpop.permute.xlu0 %497
          %499 = vrot.lane.b32.xlu0 %v429, 4
          %v500 = vpop.permute.xlu0 %499
          %501 = vrot.lane.b32.xlu0 %v431, 4
          %v502 = vpop.permute.xlu0 %501
          %503 = vrot.lane.b32.xlu0 %v434, 4
          %v504 = vpop.permute.xlu0 %503
          %505 = vrot.lane.b32.xlu0 %v436, 4
          %v506 = vpop.permute.xlu0 %505
          %507 = vrot.lane.b32.xlu0 %v439, 4
          %v508 = vpop.permute.xlu0 %507
          %509 = vrot.lane.b32.xlu0 %v441, 4
          %v510 = vpop.permute.xlu0 %509
          %511 = vrot.lane.b32.xlu0 %v444, 4
          %v512 = vpop.permute.xlu0 %511
          %513 = vrot.lane.b32.xlu0 %v446, 4
          %v514 = vpop.permute.xlu0 %513
          %515 = vrot.lane.b32.xlu0 %v449, 4
          %v516 = vpop.permute.xlu0 %515
          %517 = vrot.lane.b32.xlu0 %v451, 4
          %v518 = vpop.permute.xlu0 %517
          %519 = vrot.lane.b32.xlu0 %v454, 4
          %v520 = vpop.permute.xlu0 %519
          %521 = vrot.lane.b32.xlu0 %v456, 4
          %v522 = vpop.permute.xlu0 %521
          %523 = vrot.lane.b32.xlu0 %v459, 4
          %v524 = vpop.permute.xlu0 %523
          %525 = vrot.lane.b32.xlu0 %v461, 4
          %v526 = vpop.permute.xlu0 %525
          %527 = vrot.lane.b32.xlu0 %v464, 4
          %v528 = vpop.permute.xlu0 %527
          %529 = vrot.lane.b32.xlu0 %v466, 4
          %v530 = vpop.permute.xlu0 %529
          %vm563 = vcmask 1045504
          %v564 = vrot.slane %v284, 2
          %v565 = vrot.slane %v285, 2
          %v566 = vsel %vm563, %v564, %v565
          %v567 = vrot.slane %v286, 2
          %v568 = vsel %vm563, %v565, %v567
          %v569 = vrot.slane %v287, 2
          %v570 = vrot.slane %v288, 2
          %v571 = vsel %vm563, %v569, %v570
          %v572 = vrot.slane %v289, 2
          %v573 = vsel %vm563, %v570, %v572
          %v574 = vrot.slane %v290, 2
          %v575 = vrot.slane %v291, 2
          %v576 = vsel %vm563, %v574, %v575
          %v577 = vrot.slane %v292, 2
          %v578 = vsel %vm563, %v575, %v577
          %v579 = vrot.slane %v293, 2
          %v580 = vrot.slane %v294, 2
          %v581 = vsel %vm563, %v579, %v580
          %v582 = vrot.slane %v295, 2
          %v583 = vsel %vm563, %v580, %v582
          %v584 = vrot.slane %v296, 2
          %v585 = vrot.slane %v297, 2
          %v586 = vsel %vm563, %v584, %v585
          %v587 = vrot.slane %v298, 2
          %v588 = vsel %vm563, %v585, %v587
          %v589 = vrot.slane %v299, 2
          %v590 = vrot.slane %v300, 2
          %v591 = vsel %vm563, %v589, %v590
          %v592 = vrot.slane %v301, 2
          %v593 = vsel %vm563, %v590, %v592
          %v594 = vrot.slane %v302, 2
          %v595 = vrot.slane %v303, 2
          %v596 = vsel %vm563, %v594, %v595
          %v597 = vrot.slane %v304, 2
          %v598 = vsel %vm563, %v595, %v597
          %v599 = vrot.slane %v305, 2
          %v600 = vrot.slane %v306, 2
          %v601 = vsel %vm563, %v599, %v600
          %v602 = vrot.slane %v307, 2
          %v603 = vsel %vm563, %v600, %v602
          %v604 = vrot.slane %v308, 2
          %v605 = vrot.slane %v309, 2
          %v606 = vsel %vm563, %v604, %v605
          %v607 = vrot.slane %v310, 2
          %v608 = vsel %vm563, %v605, %v607
          %v609 = vrot.slane %v311, 2
          %v610 = vrot.slane %v312, 2
          %v611 = vsel %vm563, %v609, %v610
          %v612 = vrot.slane %v313, 2
          %v613 = vsel %vm563, %v610, %v612
          %v614 = vrot.slane %v314, 2
          %v615 = vrot.slane %v315, 2
          %v616 = vsel %vm563, %v614, %v615
          %v617 = vrot.slane %v316, 2
          %v618 = vsel %vm563, %v615, %v617
          %v619 = vrot.slane %v317, 2
          %v620 = vrot.slane %v318, 2
          %v621 = vsel %vm563, %v619, %v620
          %v622 = vrot.slane %v319, 2
          %v623 = vsel %vm563, %v620, %v622
          %v624 = vrot.slane %v320, 2
          %v625 = vrot.slane %v321, 2
          %v626 = vsel %vm563, %v624, %v625
          %v627 = vrot.slane %v322, 2
          %v628 = vsel %vm563, %v625, %v627
          %v629 = vrot.slane %v323, 2
          %v630 = vrot.slane %v324, 2
          %v631 = vsel %vm563, %v629, %v630
          %v632 = vrot.slane %v325, 2
          %v633 = vsel %vm563, %v630, %v632
          %v634 = vrot.slane %v326, 2
          %v635 = vrot.slane %v327, 2
          %v636 = vsel %vm563, %v634, %v635
          %v637 = vrot.slane %v328, 2
          %v638 = vsel %vm563, %v635, %v637
          %v639 = vrot.slane %v329, 2
          %v640 = vrot.slane %v330, 2
          %v641 = vsel %vm563, %v639, %v640
          %v642 = vrot.slane %v331, 2
          %v643 = vsel %vm563, %v640, %v642
          %644 = vrot.lane.b32.xlu0 %v566, 8
          %v645 = vpop.permute.xlu0 %644
          %646 = vrot.lane.b32.xlu0 %v568, 8
          %v647 = vpop.permute.xlu0 %646
          %648 = vrot.lane.b32.xlu0 %v571, 8
          %v649 = vpop.permute.xlu0 %648
          %650 = vrot.lane.b32.xlu0 %v573, 8
          %v651 = vpop.permute.xlu0 %650
          %652 = vrot.lane.b32.xlu0 %v576, 8
          %v653 = vpop.permute.xlu0 %652
          %654 = vrot.lane.b32.xlu0 %v578, 8
          %v655 = vpop.permute.xlu0 %654
          %656 = vrot.lane.b32.xlu0 %v581, 8
          %v657 = vpop.permute.xlu0 %656
          %658 = vrot.lane.b32.xlu0 %v583, 8
          %v659 = vpop.permute.xlu0 %658
          %660 = vrot.lane.b32.xlu0 %v586, 8
          %v661 = vpop.permute.xlu0 %660
          %662 = vrot.lane.b32.xlu0 %v588, 8
          %v663 = vpop.permute.xlu0 %662
          %664 = vrot.lane.b32.xlu0 %v591, 8
          %v665 = vpop.permute.xlu0 %664
          %666 = vrot.lane.b32.xlu0 %v593, 8
          %v667 = vpop.permute.xlu0 %666
          %668 = vrot.lane.b32.xlu0 %v596, 8
          %v669 = vpop.permute.xlu0 %668
          %670 = vrot.lane.b32.xlu0 %v598, 8
          %v671 = vpop.permute.xlu0 %670
          %672 = vrot.lane.b32.xlu0 %v601, 8
          %v673 = vpop.permute.xlu0 %672
          %674 = vrot.lane.b32.xlu0 %v603, 8
          %v675 = vpop.permute.xlu0 %674
          %676 = vrot.lane.b32.xlu0 %v606, 8
          %v677 = vpop.permute.xlu0 %676
          %678 = vrot.lane.b32.xlu0 %v608, 8
          %v679 = vpop.permute.xlu0 %678
          %680 = vrot.lane.b32.xlu0 %v611, 8
          %v681 = vpop.permute.xlu0 %680
          %682 = vrot.lane.b32.xlu0 %v613, 8
          %v683 = vpop.permute.xlu0 %682
          %684 = vrot.lane.b32.xlu0 %v616, 8
          %v685 = vpop.permute.xlu0 %684
          %686 = vrot.lane.b32.xlu0 %v618, 8
          %v687 = vpop.permute.xlu0 %686
          %688 = vrot.lane.b32.xlu0 %v621, 8
          %v689 = vpop.permute.xlu0 %688
          %690 = vrot.lane.b32.xlu0 %v623, 8
          %v691 = vpop.permute.xlu0 %690
          %692 = vrot.lane.b32.xlu0 %v626, 8
          %v693 = vpop.permute.xlu0 %692
          %694 = vrot.lane.b32.xlu0 %v628, 8
          %v695 = vpop.permute.xlu0 %694
          %696 = vrot.lane.b32.xlu0 %v631, 8
          %v697 = vpop.permute.xlu0 %696
          %698 = vrot.lane.b32.xlu0 %v633, 8
          %v699 = vpop.permute.xlu0 %698
          %700 = vrot.lane.b32.xlu0 %v636, 8
          %v701 = vpop.permute.xlu0 %700
          %702 = vrot.lane.b32.xlu0 %v638, 8
          %v703 = vpop.permute.xlu0 %702
          %704 = vrot.lane.b32.xlu0 %v641, 8
          %v705 = vpop.permute.xlu0 %704
          %706 = vrot.lane.b32.xlu0 %v643, 8
          %v707 = vpop.permute.xlu0 %706
          %742 = vrot.lane.b32.xlu0 %v287, 12
          %v743 = vpop.permute.xlu0 %742
          %744 = vrot.lane.b32.xlu0 %v288, 12
          %v745 = vpop.permute.xlu0 %744
          %746 = vrot.lane.b32.xlu0 %v290, 12
          %v747 = vpop.permute.xlu0 %746
          %748 = vrot.lane.b32.xlu0 %v291, 12
          %v749 = vpop.permute.xlu0 %748
          %750 = vrot.lane.b32.xlu0 %v293, 12
          %v751 = vpop.permute.xlu0 %750
          %752 = vrot.lane.b32.xlu0 %v294, 12
          %v753 = vpop.permute.xlu0 %752
          %754 = vrot.lane.b32.xlu0 %v296, 12
          %v755 = vpop.permute.xlu0 %754
          %756 = vrot.lane.b32.xlu0 %v297, 12
          %v757 = vpop.permute.xlu0 %756
          %758 = vrot.lane.b32.xlu0 %v299, 12
          %v759 = vpop.permute.xlu0 %758
          %760 = vrot.lane.b32.xlu0 %v300, 12
          %v761 = vpop.permute.xlu0 %760
          %762 = vrot.lane.b32.xlu0 %v302, 12
          %v763 = vpop.permute.xlu0 %762
          %764 = vrot.lane.b32.xlu0 %v303, 12
          %v765 = vpop.permute.xlu0 %764
          %766 = vrot.lane.b32.xlu0 %v305, 12
          %v767 = vpop.permute.xlu0 %766
          %768 = vrot.lane.b32.xlu0 %v306, 12
          %v769 = vpop.permute.xlu0 %768
          %770 = vrot.lane.b32.xlu0 %v308, 12
          %v771 = vpop.permute.xlu0 %770
          %772 = vrot.lane.b32.xlu0 %v309, 12
          %v773 = vpop.permute.xlu0 %772
          %774 = vrot.lane.b32.xlu0 %v311, 12
          %v775 = vpop.permute.xlu0 %774
          %776 = vrot.lane.b32.xlu0 %v312, 12
          %v777 = vpop.permute.xlu0 %776
          %778 = vrot.lane.b32.xlu0 %v314, 12
          %v779 = vpop.permute.xlu0 %778
          %780 = vrot.lane.b32.xlu0 %v315, 12
          %v781 = vpop.permute.xlu0 %780
          %782 = vrot.lane.b32.xlu0 %v317, 12
          %v783 = vpop.permute.xlu0 %782
          %784 = vrot.lane.b32.xlu0 %v318, 12
          %v785 = vpop.permute.xlu0 %784
          %786 = vrot.lane.b32.xlu0 %v320, 12
          %v787 = vpop.permute.xlu0 %786
          %788 = vrot.lane.b32.xlu0 %v321, 12
          %v789 = vpop.permute.xlu0 %788
          %790 = vrot.lane.b32.xlu0 %v323, 12
          %v791 = vpop.permute.xlu0 %790
          %792 = vrot.lane.b32.xlu0 %v324, 12
          %v793 = vpop.permute.xlu0 %792
          %794 = vrot.lane.b32.xlu0 %v326, 12
          %v795 = vpop.permute.xlu0 %794
          %796 = vrot.lane.b32.xlu0 %v327, 12
          %v797 = vpop.permute.xlu0 %796
          %798 = vrot.lane.b32.xlu0 %v329, 12
          %v799 = vpop.permute.xlu0 %798
          %800 = vrot.lane.b32.xlu0 %v330, 12
          %v801 = vpop.permute.xlu0 %800
          %802 = vrot.lane.b32.xlu0 %v332, 12
          %v803 = vpop.permute.xlu0 %802
          %804 = vrot.lane.b32.xlu0 %v333, 12
          %v805 = vpop.permute.xlu0 %804
          %v839 = vrot.slane %v332, 1
          %v840 = vrot.slane %v333, 1
          %v841 = vsel %vm386, %v839, %v840
          %v842 = vrot.slane %v334, 1
          %v843 = vsel %vm386, %v840, %v842
          %844 = vrot.lane.b32.xlu0 %v394, 16
          %v845 = vpop.permute.xlu0 %844
          %846 = vrot.lane.b32.xlu0 %v396, 16
          %v847 = vpop.permute.xlu0 %846
          %848 = vrot.lane.b32.xlu0 %v399, 16
          %v849 = vpop.permute.xlu0 %848
          %850 = vrot.lane.b32.xlu0 %v401, 16
          %v851 = vpop.permute.xlu0 %850
          %852 = vrot.lane.b32.xlu0 %v404, 16
          %v853 = vpop.permute.xlu0 %852
          %854 = vrot.lane.b32.xlu0 %v406, 16
          %v855 = vpop.permute.xlu0 %854
          %856 = vrot.lane.b32.xlu0 %v409, 16
          %v857 = vpop.permute.xlu0 %856
          %858 = vrot.lane.b32.xlu0 %v411, 16
          %v859 = vpop.permute.xlu0 %858
          %860 = vrot.lane.b32.xlu0 %v414, 16
          %v861 = vpop.permute.xlu0 %860
          %862 = vrot.lane.b32.xlu0 %v416, 16
          %v863 = vpop.permute.xlu0 %862
          %864 = vrot.lane.b32.xlu0 %v419, 16
          %v865 = vpop.permute.xlu0 %864
          %866 = vrot.lane.b32.xlu0 %v421, 16
          %v867 = vpop.permute.xlu0 %866
          %868 = vrot.lane.b32.xlu0 %v424, 16
          %v869 = vpop.permute.xlu0 %868
          %870 = vrot.lane.b32.xlu0 %v426, 16
          %v871 = vpop.permute.xlu0 %870
          %872 = vrot.lane.b32.xlu0 %v429, 16
          %v873 = vpop.permute.xlu0 %872
          %874 = vrot.lane.b32.xlu0 %v431, 16
          %v875 = vpop.permute.xlu0 %874
          %876 = vrot.lane.b32.xlu0 %v434, 16
          %v877 = vpop.permute.xlu0 %876
          %878 = vrot.lane.b32.xlu0 %v436, 16
          %v879 = vpop.permute.xlu0 %878
          %880 = vrot.lane.b32.xlu0 %v439, 16
          %v881 = vpop.permute.xlu0 %880
          %882 = vrot.lane.b32.xlu0 %v441, 16
          %v883 = vpop.permute.xlu0 %882
          %884 = vrot.lane.b32.xlu0 %v444, 16
          %v885 = vpop.permute.xlu0 %884
          %886 = vrot.lane.b32.xlu0 %v446, 16
          %v887 = vpop.permute.xlu0 %886
          %888 = vrot.lane.b32.xlu0 %v449, 16
          %v889 = vpop.permute.xlu0 %888
          %890 = vrot.lane.b32.xlu0 %v451, 16
          %v891 = vpop.permute.xlu0 %890
          %892 = vrot.lane.b32.xlu0 %v454, 16
          %v893 = vpop.permute.xlu0 %892
          %894 = vrot.lane.b32.xlu0 %v456, 16
          %v895 = vpop.permute.xlu0 %894
          %896 = vrot.lane.b32.xlu0 %v459, 16
          %v897 = vpop.permute.xlu0 %896
          %898 = vrot.lane.b32.xlu0 %v461, 16
          %v899 = vpop.permute.xlu0 %898
          %900 = vrot.lane.b32.xlu0 %v464, 16
          %v901 = vpop.permute.xlu0 %900
          %902 = vrot.lane.b32.xlu0 %v466, 16
          %v903 = vpop.permute.xlu0 %902
          %904 = vrot.lane.b32.xlu0 %v841, 16
          %v905 = vpop.permute.xlu0 %904
          %906 = vrot.lane.b32.xlu0 %v843, 16
          %v907 = vpop.permute.xlu0 %906
          %v940 = vrot.slane %v332, 2
          %v941 = vrot.slane %v333, 2
          %v942 = vsel %vm563, %v940, %v941
          %v943 = vrot.slane %v334, 2
          %v944 = vsel %vm563, %v941, %v943
          %945 = vrot.lane.b32.xlu0 %v571, 20
          %v946 = vpop.permute.xlu0 %945
          %947 = vrot.lane.b32.xlu0 %v573, 20
          %v948 = vpop.permute.xlu0 %947
          %949 = vrot.lane.b32.xlu0 %v576, 20
          %v950 = vpop.permute.xlu0 %949
          %951 = vrot.lane.b32.xlu0 %v578, 20
          %v952 = vpop.permute.xlu0 %951
          %953 = vrot.lane.b32.xlu0 %v581, 20
          %v954 = vpop.permute.xlu0 %953
          %955 = vrot.lane.b32.xlu0 %v583, 20
          %v956 = vpop.permute.xlu0 %955
          %957 = vrot.lane.b32.xlu0 %v586, 20
          %v958 = vpop.permute.xlu0 %957
          %959 = vrot.lane.b32.xlu0 %v588, 20
          %v960 = vpop.permute.xlu0 %959
          %961 = vrot.lane.b32.xlu0 %v591, 20
          %v962 = vpop.permute.xlu0 %961
          %963 = vrot.lane.b32.xlu0 %v593, 20
          %v964 = vpop.permute.xlu0 %963
          %965 = vrot.lane.b32.xlu0 %v596, 20
          %v966 = vpop.permute.xlu0 %965
          %967 = vrot.lane.b32.xlu0 %v598, 20
          %v968 = vpop.permute.xlu0 %967
          %969 = vrot.lane.b32.xlu0 %v601, 20
          %v970 = vpop.permute.xlu0 %969
          %971 = vrot.lane.b32.xlu0 %v603, 20
          %v972 = vpop.permute.xlu0 %971
          %973 = vrot.lane.b32.xlu0 %v606, 20
          %v974 = vpop.permute.xlu0 %973
          %975 = vrot.lane.b32.xlu0 %v608, 20
          %v976 = vpop.permute.xlu0 %975
          %977 = vrot.lane.b32.xlu0 %v611, 20
          %v978 = vpop.permute.xlu0 %977
          %979 = vrot.lane.b32.xlu0 %v613, 20
          %v980 = vpop.permute.xlu0 %979
          %981 = vrot.lane.b32.xlu0 %v616, 20
          %v982 = vpop.permute.xlu0 %981
          %983 = vrot.lane.b32.xlu0 %v618, 20
          %v984 = vpop.permute.xlu0 %983
          %985 = vrot.lane.b32.xlu0 %v621, 20
          %v986 = vpop.permute.xlu0 %985
          %987 = vrot.lane.b32.xlu0 %v623, 20
          %v988 = vpop.permute.xlu0 %987
          %989 = vrot.lane.b32.xlu0 %v626, 20
          %v990 = vpop.permute.xlu0 %989
          %991 = vrot.lane.b32.xlu0 %v628, 20
          %v992 = vpop.permute.xlu0 %991
          %993 = vrot.lane.b32.xlu0 %v631, 20
          %v994 = vpop.permute.xlu0 %993
          %995 = vrot.lane.b32.xlu0 %v633, 20
          %v996 = vpop.permute.xlu0 %995
          %997 = vrot.lane.b32.xlu0 %v636, 20
          %v998 = vpop.permute.xlu0 %997
          %999 = vrot.lane.b32.xlu0 %v638, 20
          %v1000 = vpop.permute.xlu0 %999
          %1001 = vrot.lane.b32.xlu0 %v641, 20
          %v1002 = vpop.permute.xlu0 %1001
          %1003 = vrot.lane.b32.xlu0 %v643, 20
          %v1004 = vpop.permute.xlu0 %1003
          %1005 = vrot.lane.b32.xlu0 %v942, 20
          %v1006 = vpop.permute.xlu0 %1005
          %1007 = vrot.lane.b32.xlu0 %v944, 20
          %v1008 = vpop.permute.xlu0 %1007
          %1043 = vrot.lane.b32.xlu0 %v290, 24
          %v1044 = vpop.permute.xlu0 %1043
          %1045 = vrot.lane.b32.xlu0 %v291, 24
          %v1046 = vpop.permute.xlu0 %1045
          %1047 = vrot.lane.b32.xlu0 %v293, 24
          %v1048 = vpop.permute.xlu0 %1047
          %1049 = vrot.lane.b32.xlu0 %v294, 24
          %v1050 = vpop.permute.xlu0 %1049
          %1051 = vrot.lane.b32.xlu0 %v296, 24
          %v1052 = vpop.permute.xlu0 %1051
          %1053 = vrot.lane.b32.xlu0 %v297, 24
          %v1054 = vpop.permute.xlu0 %1053
          %1055 = vrot.lane.b32.xlu0 %v299, 24
          %v1056 = vpop.permute.xlu0 %1055
          %1057 = vrot.lane.b32.xlu0 %v300, 24
          %v1058 = vpop.permute.xlu0 %1057
          %1059 = vrot.lane.b32.xlu0 %v302, 24
          %v1060 = vpop.permute.xlu0 %1059
          %1061 = vrot.lane.b32.xlu0 %v303, 24
          %v1062 = vpop.permute.xlu0 %1061
          %1063 = vrot.lane.b32.xlu0 %v305, 24
          %v1064 = vpop.permute.xlu0 %1063
          %1065 = vrot.lane.b32.xlu0 %v306, 24
          %v1066 = vpop.permute.xlu0 %1065
          %1067 = vrot.lane.b32.xlu0 %v308, 24
          %v1068 = vpop.permute.xlu0 %1067
          %1069 = vrot.lane.b32.xlu0 %v309, 24
          %v1070 = vpop.permute.xlu0 %1069
          %1071 = vrot.lane.b32.xlu0 %v311, 24
          %v1072 = vpop.permute.xlu0 %1071
          %1073 = vrot.lane.b32.xlu0 %v312, 24
          %v1074 = vpop.permute.xlu0 %1073
          %1075 = vrot.lane.b32.xlu0 %v314, 24
          %v1076 = vpop.permute.xlu0 %1075
          %1077 = vrot.lane.b32.xlu0 %v315, 24
          %v1078 = vpop.permute.xlu0 %1077
          %1079 = vrot.lane.b32.xlu0 %v317, 24
          %v1080 = vpop.permute.xlu0 %1079
          %1081 = vrot.lane.b32.xlu0 %v318, 24
          %v1082 = vpop.permute.xlu0 %1081
          %1083 = vrot.lane.b32.xlu0 %v320, 24
          %v1084 = vpop.permute.xlu0 %1083
          %1085 = vrot.lane.b32.xlu0 %v321, 24
          %v1086 = vpop.permute.xlu0 %1085
          %1087 = vrot.lane.b32.xlu0 %v323, 24
          %v1088 = vpop.permute.xlu0 %1087
          %1089 = vrot.lane.b32.xlu0 %v324, 24
          %v1090 = vpop.permute.xlu0 %1089
          %1091 = vrot.lane.b32.xlu0 %v326, 24
          %v1092 = vpop.permute.xlu0 %1091
          %1093 = vrot.lane.b32.xlu0 %v327, 24
          %v1094 = vpop.permute.xlu0 %1093
          %1095 = vrot.lane.b32.xlu0 %v329, 24
          %v1096 = vpop.permute.xlu0 %1095
          %1097 = vrot.lane.b32.xlu0 %v330, 24
          %v1098 = vpop.permute.xlu0 %1097
          %1099 = vrot.lane.b32.xlu0 %v332, 24
          %v1100 = vpop.permute.xlu0 %1099
          %1101 = vrot.lane.b32.xlu0 %v333, 24
          %v1102 = vpop.permute.xlu0 %1101
          %1103 = vrot.lane.b32.xlu0 %v335, 24
          %v1104 = vpop.permute.xlu0 %1103
          %1105 = vrot.lane.b32.xlu0 %v336, 24
          %v1106 = vpop.permute.xlu0 %1105
          %v1140 = vrot.slane %v335, 1
          %v1141 = vrot.slane %v336, 1
          %v1142 = vsel %vm386, %v1140, %v1141
          %v1143 = vrot.slane %v337, 1
          %v1144 = vsel %vm386, %v1141, %v1143
          %1145 = vrot.lane.b32.xlu0 %v399, 28
          %v1146 = vpop.permute.xlu0 %1145
          %1147 = vrot.lane.b32.xlu0 %v401, 28
          %v1148 = vpop.permute.xlu0 %1147
          %1149 = vrot.lane.b32.xlu0 %v404, 28
          %v1150 = vpop.permute.xlu0 %1149
          %1151 = vrot.lane.b32.xlu0 %v406, 28
          %v1152 = vpop.permute.xlu0 %1151
          %1153 = vrot.lane.b32.xlu0 %v409, 28
          %v1154 = vpop.permute.xlu0 %1153
          %1155 = vrot.lane.b32.xlu0 %v411, 28
          %v1156 = vpop.permute.xlu0 %1155
          %1157 = vrot.lane.b32.xlu0 %v414, 28
          %v1158 = vpop.permute.xlu0 %1157
          %1159 = vrot.lane.b32.xlu0 %v416, 28
          %v1160 = vpop.permute.xlu0 %1159
          %1161 = vrot.lane.b32.xlu0 %v419, 28
          %v1162 = vpop.permute.xlu0 %1161
          %1163 = vrot.lane.b32.xlu0 %v421, 28
          %v1164 = vpop.permute.xlu0 %1163
          %1165 = vrot.lane.b32.xlu0 %v424, 28
          %v1166 = vpop.permute.xlu0 %1165
          %1167 = vrot.lane.b32.xlu0 %v426, 28
          %v1168 = vpop.permute.xlu0 %1167
          %1169 = vrot.lane.b32.xlu0 %v429, 28
          %v1170 = vpop.permute.xlu0 %1169
          %1171 = vrot.lane.b32.xlu0 %v431, 28
          %v1172 = vpop.permute.xlu0 %1171
          %1173 = vrot.lane.b32.xlu0 %v434, 28
          %v1174 = vpop.permute.xlu0 %1173
          %1175 = vrot.lane.b32.xlu0 %v436, 28
          %v1176 = vpop.permute.xlu0 %1175
          %1177 = vrot.lane.b32.xlu0 %v439, 28
          %v1178 = vpop.permute.xlu0 %1177
          %1179 = vrot.lane.b32.xlu0 %v441, 28
          %v1180 = vpop.permute.xlu0 %1179
          %1181 = vrot.lane.b32.xlu0 %v444, 28
          %v1182 = vpop.permute.xlu0 %1181
          %1183 = vrot.lane.b32.xlu0 %v446, 28
          %v1184 = vpop.permute.xlu0 %1183
          %1185 = vrot.lane.b32.xlu0 %v449, 28
          %v1186 = vpop.permute.xlu0 %1185
          %1187 = vrot.lane.b32.xlu0 %v451, 28
          %v1188 = vpop.permute.xlu0 %1187
          %1189 = vrot.lane.b32.xlu0 %v454, 28
          %v1190 = vpop.permute.xlu0 %1189
          %1191 = vrot.lane.b32.xlu0 %v456, 28
          %v1192 = vpop.permute.xlu0 %1191
          %1193 = vrot.lane.b32.xlu0 %v459, 28
          %v1194 = vpop.permute.xlu0 %1193
          %1195 = vrot.lane.b32.xlu0 %v461, 28
          %v1196 = vpop.permute.xlu0 %1195
          %1197 = vrot.lane.b32.xlu0 %v464, 28
          %v1198 = vpop.permute.xlu0 %1197
          %1199 = vrot.lane.b32.xlu0 %v466, 28
          %v1200 = vpop.permute.xlu0 %1199
          %1201 = vrot.lane.b32.xlu0 %v841, 28
          %v1202 = vpop.permute.xlu0 %1201
          %1203 = vrot.lane.b32.xlu0 %v843, 28
          %v1204 = vpop.permute.xlu0 %1203
          %1205 = vrot.lane.b32.xlu0 %v1142, 28
          %v1206 = vpop.permute.xlu0 %1205
          %1207 = vrot.lane.b32.xlu0 %v1144, 28
          %v1208 = vpop.permute.xlu0 %1207
          %v1241 = vrot.slane %v335, 2
          %v1242 = vrot.slane %v336, 2
          %v1243 = vsel %vm563, %v1241, %v1242
          %v1244 = vrot.slane %v337, 2
          %v1245 = vsel %vm563, %v1242, %v1244
          %1246 = vrot.lane.b32.xlu0 %v576, 32
          %v1247 = vpop.permute.xlu0 %1246
          %1248 = vrot.lane.b32.xlu0 %v578, 32
          %v1249 = vpop.permute.xlu0 %1248
          %1250 = vrot.lane.b32.xlu0 %v581, 32
          %v1251 = vpop.permute.xlu0 %1250
          %1252 = vrot.lane.b32.xlu0 %v583, 32
          %v1253 = vpop.permute.xlu0 %1252
          %1254 = vrot.lane.b32.xlu0 %v586, 32
          %v1255 = vpop.permute.xlu0 %1254
          %1256 = vrot.lane.b32.xlu0 %v588, 32
          %v1257 = vpop.permute.xlu0 %1256
          %1258 = vrot.lane.b32.xlu0 %v591, 32
          %v1259 = vpop.permute.xlu0 %1258
          %1260 = vrot.lane.b32.xlu0 %v593, 32
          %v1261 = vpop.permute.xlu0 %1260
          %1262 = vrot.lane.b32.xlu0 %v596, 32
          %v1263 = vpop.permute.xlu0 %1262
          %1264 = vrot.lane.b32.xlu0 %v598, 32
          %v1265 = vpop.permute.xlu0 %1264
          %1266 = vrot.lane.b32.xlu0 %v601, 32
          %v1267 = vpop.permute.xlu0 %1266
          %1268 = vrot.lane.b32.xlu0 %v603, 32
          %v1269 = vpop.permute.xlu0 %1268
          %1270 = vrot.lane.b32.xlu0 %v606, 32
          %v1271 = vpop.permute.xlu0 %1270
          %1272 = vrot.lane.b32.xlu0 %v608, 32
          %v1273 = vpop.permute.xlu0 %1272
          %1274 = vrot.lane.b32.xlu0 %v611, 32
          %v1275 = vpop.permute.xlu0 %1274
          %1276 = vrot.lane.b32.xlu0 %v613, 32
          %v1277 = vpop.permute.xlu0 %1276
          %1278 = vrot.lane.b32.xlu0 %v616, 32
          %v1279 = vpop.permute.xlu0 %1278
          %1280 = vrot.lane.b32.xlu0 %v618, 32
          %v1281 = vpop.permute.xlu0 %1280
          %1282 = vrot.lane.b32.xlu0 %v621, 32
          %v1283 = vpop.permute.xlu0 %1282
          %1284 = vrot.lane.b32.xlu0 %v623, 32
          %v1285 = vpop.permute.xlu0 %1284
          %1286 = vrot.lane.b32.xlu0 %v626, 32
          %v1287 = vpop.permute.xlu0 %1286
          %1288 = vrot.lane.b32.xlu0 %v628, 32
          %v1289 = vpop.permute.xlu0 %1288
          %1290 = vrot.lane.b32.xlu0 %v631, 32
          %v1291 = vpop.permute.xlu0 %1290
          %1292 = vrot.lane.b32.xlu0 %v633, 32
          %v1293 = vpop.permute.xlu0 %1292
          %1294 = vrot.lane.b32.xlu0 %v636, 32
          %v1295 = vpop.permute.xlu0 %1294
          %1296 = vrot.lane.b32.xlu0 %v638, 32
          %v1297 = vpop.permute.xlu0 %1296
          %1298 = vrot.lane.b32.xlu0 %v641, 32
          %v1299 = vpop.permute.xlu0 %1298
          %1300 = vrot.lane.b32.xlu0 %v643, 32
          %v1301 = vpop.permute.xlu0 %1300
          %1302 = vrot.lane.b32.xlu0 %v942, 32
          %v1303 = vpop.permute.xlu0 %1302
          %1304 = vrot.lane.b32.xlu0 %v944, 32
          %v1305 = vpop.permute.xlu0 %1304
          %1306 = vrot.lane.b32.xlu0 %v1243, 32
          %v1307 = vpop.permute.xlu0 %1306
          %1308 = vrot.lane.b32.xlu0 %v1245, 32
          %v1309 = vpop.permute.xlu0 %1308
          %v1342 = vsel %vm177, %v284, %v468
          %v1343 = vsel %vm177, %v285, %v470
          %v1344 = vsel %vm177, %v287, %v472
          %v1345 = vsel %vm177, %v288, %v474
          %v1346 = vsel %vm177, %v290, %v476
          %v1347 = vsel %vm177, %v291, %v478
          %v1348 = vsel %vm177, %v293, %v480
          %v1349 = vsel %vm177, %v294, %v482
          %v1350 = vsel %vm177, %v296, %v484
          %v1351 = vsel %vm177, %v297, %v486
          %v1352 = vsel %vm177, %v299, %v488
          %v1353 = vsel %vm177, %v300, %v490
          %v1354 = vsel %vm177, %v302, %v492
          %v1355 = vsel %vm177, %v303, %v494
          %v1356 = vsel %vm177, %v305, %v496
          %v1357 = vsel %vm177, %v306, %v498
          %v1358 = vsel %vm177, %v308, %v500
          %v1359 = vsel %vm177, %v309, %v502
          %v1360 = vsel %vm177, %v311, %v504
          %v1361 = vsel %vm177, %v312, %v506
          %v1362 = vsel %vm177, %v314, %v508
          %v1363 = vsel %vm177, %v315, %v510
          %v1364 = vsel %vm177, %v317, %v512
          %v1365 = vsel %vm177, %v318, %v514
          %v1366 = vsel %vm177, %v320, %v516
          %v1367 = vsel %vm177, %v321, %v518
          %v1368 = vsel %vm177, %v323, %v520
          %v1369 = vsel %vm177, %v324, %v522
          %v1370 = vsel %vm177, %v326, %v524
          %v1371 = vsel %vm177, %v327, %v526
          %v1372 = vsel %vm177, %v329, %v528
          %v1373 = vsel %vm177, %v330, %v530
          %vm1374 = vcmask 64512
          %v1375 = vsel %vm1374, %v1342, %v645
          %v1376 = vsel %vm1374, %v1343, %v647
          %v1377 = vsel %vm1374, %v1344, %v649
          %v1378 = vsel %vm1374, %v1345, %v651
          %v1379 = vsel %vm1374, %v1346, %v653
          %v1380 = vsel %vm1374, %v1347, %v655
          %v1381 = vsel %vm1374, %v1348, %v657
          %v1382 = vsel %vm1374, %v1349, %v659
          %v1383 = vsel %vm1374, %v1350, %v661
          %v1384 = vsel %vm1374, %v1351, %v663
          %v1385 = vsel %vm1374, %v1352, %v665
          %v1386 = vsel %vm1374, %v1353, %v667
          %v1387 = vsel %vm1374, %v1354, %v669
          %v1388 = vsel %vm1374, %v1355, %v671
          %v1389 = vsel %vm1374, %v1356, %v673
          %v1390 = vsel %vm1374, %v1357, %v675
          %v1391 = vsel %vm1374, %v1358, %v677
          %v1392 = vsel %vm1374, %v1359, %v679
          %v1393 = vsel %vm1374, %v1360, %v681
          %v1394 = vsel %vm1374, %v1361, %v683
          %v1395 = vsel %vm1374, %v1362, %v685
          %v1396 = vsel %vm1374, %v1363, %v687
          %v1397 = vsel %vm1374, %v1364, %v689
          %v1398 = vsel %vm1374, %v1365, %v691
          %v1399 = vsel %vm1374, %v1366, %v693
          %v1400 = vsel %vm1374, %v1367, %v695
          %v1401 = vsel %vm1374, %v1368, %v697
          %v1402 = vsel %vm1374, %v1369, %v699
          %v1403 = vsel %vm1374, %v1370, %v701
          %v1404 = vsel %vm1374, %v1371, %v703
          %v1405 = vsel %vm1374, %v1372, %v705
          %v1406 = vsel %vm1374, %v1373, %v707
          %vm1407 = vcmask 97280
          %v1408 = vsel %vm1407, %v1375, %v743
          %v1409 = vsel %vm1407, %v1376, %v745
          %v1410 = vsel %vm1407, %v1377, %v747
          %v1411 = vsel %vm1407, %v1378, %v749
          %v1412 = vsel %vm1407, %v1379, %v751
          %v1413 = vsel %vm1407, %v1380, %v753
          %v1414 = vsel %vm1407, %v1381, %v755
          %v1415 = vsel %vm1407, %v1382, %v757
          %v1416 = vsel %vm1407, %v1383, %v759
          %v1417 = vsel %vm1407, %v1384, %v761
          %v1418 = vsel %vm1407, %v1385, %v763
          %v1419 = vsel %vm1407, %v1386, %v765
          %v1420 = vsel %vm1407, %v1387, %v767
          %v1421 = vsel %vm1407, %v1388, %v769
          %v1422 = vsel %vm1407, %v1389, %v771
          %v1423 = vsel %vm1407, %v1390, %v773
          %v1424 = vsel %vm1407, %v1391, %v775
          %v1425 = vsel %vm1407, %v1392, %v777
          %v1426 = vsel %vm1407, %v1393, %v779
          %v1427 = vsel %vm1407, %v1394, %v781
          %v1428 = vsel %vm1407, %v1395, %v783
          %v1429 = vsel %vm1407, %v1396, %v785
          %v1430 = vsel %vm1407, %v1397, %v787
          %v1431 = vsel %vm1407, %v1398, %v789
          %v1432 = vsel %vm1407, %v1399, %v791
          %v1433 = vsel %vm1407, %v1400, %v793
          %v1434 = vsel %vm1407, %v1401, %v795
          %v1435 = vsel %vm1407, %v1402, %v797
          %v1436 = vsel %vm1407, %v1403, %v799
          %v1437 = vsel %vm1407, %v1404, %v801
          %v1438 = vsel %vm1407, %v1405, %v803
          %v1439 = vsel %vm1407, %v1406, %v805
          %vm1440 = vcmask 130048
          %v1441 = vsel %vm1440, %v1408, %v845
          %v1442 = vsel %vm1440, %v1409, %v847
          %v1443 = vsel %vm1440, %v1410, %v849
          %v1444 = vsel %vm1440, %v1411, %v851
          %v1445 = vsel %vm1440, %v1412, %v853
          %v1446 = vsel %vm1440, %v1413, %v855
          %v1447 = vsel %vm1440, %v1414, %v857
          %v1448 = vsel %vm1440, %v1415, %v859
          %v1449 = vsel %vm1440, %v1416, %v861
          %v1450 = vsel %vm1440, %v1417, %v863
          %v1451 = vsel %vm1440, %v1418, %v865
          %v1452 = vsel %vm1440, %v1419, %v867
          %v1453 = vsel %vm1440, %v1420, %v869
          %v1454 = vsel %vm1440, %v1421, %v871
          %v1455 = vsel %vm1440, %v1422, %v873
          %v1456 = vsel %vm1440, %v1423, %v875
          %v1457 = vsel %vm1440, %v1424, %v877
          %v1458 = vsel %vm1440, %v1425, %v879
          %v1459 = vsel %vm1440, %v1426, %v881
          %v1460 = vsel %vm1440, %v1427, %v883
          %v1461 = vsel %vm1440, %v1428, %v885
          %v1462 = vsel %vm1440, %v1429, %v887
          %v1463 = vsel %vm1440, %v1430, %v889
          %v1464 = vsel %vm1440, %v1431, %v891
          %v1465 = vsel %vm1440, %v1432, %v893
          %v1466 = vsel %vm1440, %v1433, %v895
          %v1467 = vsel %vm1440, %v1434, %v897
          %v1468 = vsel %vm1440, %v1435, %v899
          %v1469 = vsel %vm1440, %v1436, %v901
          %v1470 = vsel %vm1440, %v1437, %v903
          %v1471 = vsel %vm1440, %v1438, %v905
          %v1472 = vsel %vm1440, %v1439, %v907
          %vm1473 = vcmask 162816
          %v1474 = vsel %vm1473, %v1441, %v946
          %v1475 = vsel %vm1473, %v1442, %v948
          %v1476 = vsel %vm1473, %v1443, %v950
          %v1477 = vsel %vm1473, %v1444, %v952
          %v1478 = vsel %vm1473, %v1445, %v954
          %v1479 = vsel %vm1473, %v1446, %v956
          %v1480 = vsel %vm1473, %v1447, %v958
          %v1481 = vsel %vm1473, %v1448, %v960
          %v1482 = vsel %vm1473, %v1449, %v962
          %v1483 = vsel %vm1473, %v1450, %v964
          %v1484 = vsel %vm1473, %v1451, %v966
          %v1485 = vsel %vm1473, %v1452, %v968
          %v1486 = vsel %vm1473, %v1453, %v970
          %v1487 = vsel %vm1473, %v1454, %v972
          %v1488 = vsel %vm1473, %v1455, %v974
          %v1489 = vsel %vm1473, %v1456, %v976
          %v1490 = vsel %vm1473, %v1457, %v978
          %v1491 = vsel %vm1473, %v1458, %v980
          %v1492 = vsel %vm1473, %v1459, %v982
          %v1493 = vsel %vm1473, %v1460, %v984
          %v1494 = vsel %vm1473, %v1461, %v986
          %v1495 = vsel %vm1473, %v1462, %v988
          %v1496 = vsel %vm1473, %v1463, %v990
          %v1497 = vsel %vm1473, %v1464, %v992
          %v1498 = vsel %vm1473, %v1465, %v994
          %v1499 = vsel %vm1473, %v1466, %v996
          %v1500 = vsel %vm1473, %v1467, %v998
          %v1501 = vsel %vm1473, %v1468, %v1000
          %v1502 = vsel %vm1473, %v1469, %v1002
          %v1503 = vsel %vm1473, %v1470, %v1004
          %v1504 = vsel %vm1473, %v1471, %v1006
          %v1505 = vsel %vm1473, %v1472, %v1008
          %vm1506 = vcmask 195584
          %v1507 = vsel %vm1506, %v1474, %v1044
          %v1508 = vsel %vm1506, %v1475, %v1046
          %v1509 = vsel %vm1506, %v1476, %v1048
          %v1510 = vsel %vm1506, %v1477, %v1050
          %v1511 = vsel %vm1506, %v1478, %v1052
          %v1512 = vsel %vm1506, %v1479, %v1054
          %v1513 = vsel %vm1506, %v1480, %v1056
          %v1514 = vsel %vm1506, %v1481, %v1058
          %v1515 = vsel %vm1506, %v1482, %v1060
          %v1516 = vsel %vm1506, %v1483, %v1062
          %v1517 = vsel %vm1506, %v1484, %v1064
          %v1518 = vsel %vm1506, %v1485, %v1066
          %v1519 = vsel %vm1506, %v1486, %v1068
          %v1520 = vsel %vm1506, %v1487, %v1070
          %v1521 = vsel %vm1506, %v1488, %v1072
          %v1522 = vsel %vm1506, %v1489, %v1074
          %v1523 = vsel %vm1506, %v1490, %v1076
          %v1524 = vsel %vm1506, %v1491, %v1078
          %v1525 = vsel %vm1506, %v1492, %v1080
          %v1526 = vsel %vm1506, %v1493, %v1082
          %v1527 = vsel %vm1506, %v1494, %v1084
          %v1528 = vsel %vm1506, %v1495, %v1086
          %v1529 = vsel %vm1506, %v1496, %v1088
          %v1530 = vsel %vm1506, %v1497, %v1090
          %v1531 = vsel %vm1506, %v1498, %v1092
          %v1532 = vsel %vm1506, %v1499, %v1094
          %v1533 = vsel %vm1506, %v1500, %v1096
          %v1534 = vsel %vm1506, %v1501, %v1098
          %v1535 = vsel %vm1506, %v1502, %v1100
          %v1536 = vsel %vm1506, %v1503, %v1102
          %v1537 = vsel %vm1506, %v1504, %v1104
          %v1538 = vsel %vm1506, %v1505, %v1106
          %vm1539 = vcmask 228352
          %v1540 = vsel %vm1539, %v1507, %v1146
          %v1541 = vsel %vm1539, %v1508, %v1148
          %v1542 = vsel %vm1539, %v1509, %v1150
          %v1543 = vsel %vm1539, %v1510, %v1152
          %v1544 = vsel %vm1539, %v1511, %v1154
          %v1545 = vsel %vm1539, %v1512, %v1156
          %v1546 = vsel %vm1539, %v1513, %v1158
          %v1547 = vsel %vm1539, %v1514, %v1160
          %v1548 = vsel %vm1539, %v1515, %v1162
          %v1549 = vsel %vm1539, %v1516, %v1164
          %v1550 = vsel %vm1539, %v1517, %v1166
          %v1551 = vsel %vm1539, %v1518, %v1168
          %v1552 = vsel %vm1539, %v1519, %v1170
          %v1553 = vsel %vm1539, %v1520, %v1172
          %v1554 = vsel %vm1539, %v1521, %v1174
          %v1555 = vsel %vm1539, %v1522, %v1176
          %v1556 = vsel %vm1539, %v1523, %v1178
          %v1557 = vsel %vm1539, %v1524, %v1180
          %v1558 = vsel %vm1539, %v1525, %v1182
          %v1559 = vsel %vm1539, %v1526, %v1184
          %v1560 = vsel %vm1539, %v1527, %v1186
          %v1561 = vsel %vm1539, %v1528, %v1188
          %v1562 = vsel %vm1539, %v1529, %v1190
          %v1563 = vsel %vm1539, %v1530, %v1192
          %v1564 = vsel %vm1539, %v1531, %v1194
          %v1565 = vsel %vm1539, %v1532, %v1196
          %v1566 = vsel %vm1539, %v1533, %v1198
          %v1567 = vsel %vm1539, %v1534, %v1200
          %v1568 = vsel %vm1539, %v1535, %v1202
          %v1569 = vsel %vm1539, %v1536, %v1204
          %v1570 = vsel %vm1539, %v1537, %v1206
          %v1571 = vsel %vm1539, %v1538, %v1208
          %vm1572 = vcmask 261120
          %v1573 = vsel %vm1572, %v1540, %v1247
          %v1574 = vsel %vm1572, %v1541, %v1249
          %v1575 = vsel %vm1572, %v1542, %v1251
          %v1576 = vsel %vm1572, %v1543, %v1253
          %v1577 = vsel %vm1572, %v1544, %v1255
          %v1578 = vsel %vm1572, %v1545, %v1257
          %v1579 = vsel %vm1572, %v1546, %v1259
          %v1580 = vsel %vm1572, %v1547, %v1261
          %v1581 = vsel %vm1572, %v1548, %v1263
          %v1582 = vsel %vm1572, %v1549, %v1265
          %v1583 = vsel %vm1572, %v1550, %v1267
          %v1584 = vsel %vm1572, %v1551, %v1269
          %v1585 = vsel %vm1572, %v1552, %v1271
          %v1586 = vsel %vm1572, %v1553, %v1273
          %v1587 = vsel %vm1572, %v1554, %v1275
          %v1588 = vsel %vm1572, %v1555, %v1277
          %v1589 = vsel %vm1572, %v1556, %v1279
          %v1590 = vsel %vm1572, %v1557, %v1281
          %v1591 = vsel %vm1572, %v1558, %v1283
          %v1592 = vsel %vm1572, %v1559, %v1285
          %v1593 = vsel %vm1572, %v1560, %v1287
          %v1594 = vsel %vm1572, %v1561, %v1289
          %v1595 = vsel %vm1572, %v1562, %v1291
          %v1596 = vsel %vm1572, %v1563, %v1293
          %v1597 = vsel %vm1572, %v1564, %v1295
          %v1598 = vsel %vm1572, %v1565, %v1297
          %v1599 = vsel %vm1572, %v1566, %v1299
          %v1600 = vsel %vm1572, %v1567, %v1301
          %v1601 = vsel %vm1572, %v1568, %v1303
          %v1602 = vsel %vm1572, %v1569, %v1305
          %v1603 = vsel %vm1572, %v1570, %v1307
          %v1604 = vsel %vm1572, %v1571, %v1309
          %vm1605 = vcmask 293888
          %1606 = vst.msk [vmem:[#allocation2] sm:$0xff] %vm1605, %v1573
          %1607 = vst.msk [vmem:[#allocation2 + $0x8] sm:$0xff] %vm1605, %v1574
          %1608 = vst.msk [vmem:[#allocation2 + $0x10] sm:$0xff] %vm1605, %v1575
          %1609 = vst.msk [vmem:[#allocation2 + $0x18] sm:$0xff] %vm1605, %v1576
          %1610 = vst.msk [vmem:[#allocation2 + $0x20] sm:$0xff] %vm1605, %v1577
          %1611 = vst.msk [vmem:[#allocation2 + $0x28] sm:$0xff] %vm1605, %v1578
          %1612 = vst.msk [vmem:[#allocation2 + $0x30] sm:$0xff] %vm1605, %v1579
          %1613 = vst.msk [vmem:[#allocation2 + $0x38] sm:$0xff] %vm1605, %v1580
          %1614 = vst.msk [vmem:[#allocation2 + $0x40] sm:$0xff] %vm1605, %v1581
          %1615 = vst.msk [vmem:[#allocation2 + $0x48] sm:$0xff] %vm1605, %v1582
          %1616 = vst.msk [vmem:[#allocation2 + $0x50] sm:$0xff] %vm1605, %v1583
          %1617 = vst.msk [vmem:[#allocation2 + $0x58] sm:$0xff] %vm1605, %v1584
          %1618 = vst.msk [vmem:[#allocation2 + $0x60] sm:$0xff] %vm1605, %v1585
          %1619 = vst.msk [vmem:[#allocation2 + $0x68] sm:$0xff] %vm1605, %v1586
          %1620 = vst.msk [vmem:[#allocation2 + $0x70] sm:$0xff] %vm1605, %v1587
          %1621 = vst.msk [vmem:[#allocation2 + $0x78] sm:$0xff] %vm1605, %v1588
          %1622 = vst.msk [vmem:[#allocation2 + $0x80] sm:$0xff] %vm1605, %v1589
          %1623 = vst.msk [vmem:[#allocation2 + $0x88] sm:$0xff] %vm1605, %v1590
          %1624 = vst.msk [vmem:[#allocation2 + $0x90] sm:$0xff] %vm1605, %v1591
          %1625 = vst.msk [vmem:[#allocation2 + $0x98] sm:$0xff] %vm1605, %v1592
          %1626 = vst.msk [vmem:[#allocation2 + $0xa0] sm:$0xff] %vm1605, %v1593
          %1627 = vst.msk [vmem:[#allocation2 + $0xa8] sm:$0xff] %vm1605, %v1594
          %1628 = vst.msk [vmem:[#allocation2 + $0xb0] sm:$0xff] %vm1605, %v1595
          %1629 = vst.msk [vmem:[#allocation2 + $0xb8] sm:$0xff] %vm1605, %v1596
          %1630 = vst.msk [vmem:[#allocation2 + $0xc0] sm:$0xff] %vm1605, %v1597
          %1631 = vst.msk [vmem:[#allocation2 + $0xc8] sm:$0xff] %vm1605, %v1598
          %1632 = vst.msk [vmem:[#allocation2 + $0xd0] sm:$0xff] %vm1605, %v1599
          %1633 = vst.msk [vmem:[#allocation2 + $0xd8] sm:$0xff] %vm1605, %v1600
          %1634 = vst.msk [vmem:[#allocation2 + $0xe0] sm:$0xff] %vm1605, %v1601
          %1635 = vst.msk [vmem:[#allocation2 + $0xe8] sm:$0xff] %vm1605, %v1602
          %1636 = vst.msk [vmem:[#allocation2 + $0xf0] sm:$0xff] %vm1605, %v1603
          %1637 = vst.msk [vmem:[#allocation2 + $0xf8] sm:$0xff] %vm1605, %v1604
        $region32: #{tpu_custom_call.1} parent=27 // pred_fallthru
          _
        %v1638 = vld [vmem:[#allocation2] sm:$0xff]
        %v1639 = vld [vmem:[#allocation2 + $0x8] sm:$0xff]
        %v1640 = vld [vmem:[#allocation2 + $0x10] sm:$0xff]
        %v1641 = vld [vmem:[#allocation2 + $0x18] sm:$0xff]
        %v1642 = vld [vmem:[#allocation2 + $0x20] sm:$0xff]
        %v1643 = vld [vmem:[#allocation2 + $0x28] sm:$0xff]
        %v1644 = vld [vmem:[#allocation2 + $0x30] sm:$0xff]
        %v1645 = vld [vmem:[#allocation2 + $0x38] sm:$0xff]
        %v1646 = vld [vmem:[#allocation2 + $0x40] sm:$0xff]
        %v1647 = vld [vmem:[#allocation2 + $0x48] sm:$0xff]
        %v1648 = vld [vmem:[#allocation2 + $0x50] sm:$0xff]
        %v1649 = vld [vmem:[#allocation2 + $0x58] sm:$0xff]
        %v1650 = vld [vmem:[#allocation2 + $0x60] sm:$0xff]
        %v1651 = vld [vmem:[#allocation2 + $0x68] sm:$0xff]
        %v1652 = vld [vmem:[#allocation2 + $0x70] sm:$0xff]
        %v1653 = vld [vmem:[#allocation2 + $0x78] sm:$0xff]
        %v1654 = vld [vmem:[#allocation2 + $0x80] sm:$0xff]
        %v1655 = vld [vmem:[#allocation2 + $0x88] sm:$0xff]
        %v1656 = vld [vmem:[#allocation2 + $0x90] sm:$0xff]
        %v1657 = vld [vmem:[#allocation2 + $0x98] sm:$0xff]
        %v1658 = vld [vmem:[#allocation2 + $0xa0] sm:$0xff]
        %v1659 = vld [vmem:[#allocation2 + $0xa8] sm:$0xff]
        %v1660 = vld [vmem:[#allocation2 + $0xb0] sm:$0xff]
        %v1661 = vld [vmem:[#allocation2 + $0xb8] sm:$0xff]
        %v1662 = vld [vmem:[#allocation2 + $0xc0] sm:$0xff]
        %v1663 = vld [vmem:[#allocation2 + $0xc8] sm:$0xff]
        %v1664 = vld [vmem:[#allocation2 + $0xd0] sm:$0xff]
        %v1665 = vld [vmem:[#allocation2 + $0xd8] sm:$0xff]
        %v1666 = vld [vmem:[#allocation2 + $0xe0] sm:$0xff]
        %v1667 = vld [vmem:[#allocation2 + $0xe8] sm:$0xff]
        %v1668 = vld [vmem:[#allocation2 + $0xf0] sm:$0xff]
        %v1669 = vld [vmem:[#allocation2 + $0xf8] sm:$0xff]
        %v1670 = vld [vmem:[%s172] sm:$0xff]
        %v1671 = vld [vmem:[%s172 + $0x8] sm:$0xff]
        %v1672 = vld [vmem:[%s172 + $0x10] sm:$0xff]
        %v1673 = vld [vmem:[%s172 + $0x18] sm:$0xff]
        %v1674 = vld [vmem:[%s172 + $0x20] sm:$0xf]
        %vm1675 = vcmask 293888
        %v1677 = vsel %vm1675, %v1638, 0
        %v1680 = vsel %vm1675, %v1639, 0
        %v1683 = vsel %vm1675, %v1640, 0
        %v1686 = vsel %vm1675, %v1641, 0
        %v1689 = vsel %vm1675, %v1642, 0
        %v1692 = vsel %vm1675, %v1643, 0
        %v1695 = vsel %vm1675, %v1644, 0
        %v1698 = vsel %vm1675, %v1645, 0
        %v1701 = vsel %vm1675, %v1646, 0
        %v1704 = vsel %vm1675, %v1647, 0
        %v1707 = vsel %vm1675, %v1648, 0
        %v1710 = vsel %vm1675, %v1649, 0
        %v1713 = vsel %vm1675, %v1650, 0
        %v1716 = vsel %vm1675, %v1651, 0
        %v1719 = vsel %vm1675, %v1652, 0
        %v1722 = vsel %vm1675, %v1653, 0
        %v1725 = vsel %vm1675, %v1654, 0
        %v1728 = vsel %vm1675, %v1655, 0
        %v1731 = vsel %vm1675, %v1656, 0
        %v1734 = vsel %vm1675, %v1657, 0
        %v1737 = vsel %vm1675, %v1658, 0
        %v1740 = vsel %vm1675, %v1659, 0
        %v1743 = vsel %vm1675, %v1660, 0
        %v1746 = vsel %vm1675, %v1661, 0
        %v1749 = vsel %vm1675, %v1662, 0
        %v1752 = vsel %vm1675, %v1663, 0
        %v1755 = vsel %vm1675, %v1664, 0
        %v1758 = vsel %vm1675, %v1665, 0
        %v1761 = vsel %vm1675, %v1666, 0
        %v1764 = vsel %vm1675, %v1667, 0
        %v1767 = vsel %vm1675, %v1668, 0
        %v1770 = vsel %vm1675, %v1669, 0
        %vm1772 = vcmask 1043456
        %v1774 = vsel %vm1772, %v1674, 0
        %1776 = vmatpush.msra.mxu0 0.0
        %1777 = vmatpush.msra.mxu0 0.0
        %1778 = vmatpush.msra.mxu0 0.0
        %1779 = vmatpush.msra.mxu0 0.0
        %1780 = vmatpush.msra.mxu0 0.0
        %1781 = vmatpush.msra.mxu0 0.0
        %1782 = vmatpush.msra.mxu0 0.0
        %1783 = vmatpush.msra.mxu0 0.0
        %1784 = vmatpush.msra.mxu0 0.0
        %1785 = vmatpush.msra.mxu0 0.0
        %1786 = vmatpush.msra.mxu0 0.0
        %1787 = vmatpush.msra.mxu0 %v1774
        %1788 = vmatpush.msra.mxu0 %v1673
        %1789 = vmatpush.msra.mxu0 %v1672
        %1790 = vmatpush.msra.mxu0 %v1671
        %1791 = vmatpush.msra.mxu0 %v1670
        %1792 = vmatmul.f32.gmra.mxu0 %v1677
        %v1793 = vpop.f32.mrf.mxu0
        %v1794 = vadd.f32 0.0, %v1793
        %1795 = vmatmul.f32.gmra.mxu0 %v1680
        %v1796 = vpop.f32.mrf.mxu0
        %v1797 = vadd.f32 0.0, %v1796
        %1798 = vmatmul.f32.gmra.mxu0 %v1683
        %v1799 = vpop.f32.mrf.mxu0
        %v1800 = vadd.f32 0.0, %v1799
        %1801 = vmatmul.f32.gmra.mxu0 %v1686
        %v1802 = vpop.f32.mrf.mxu0
        %v1803 = vadd.f32 0.0, %v1802
        %1804 = vmatmul.f32.gmra.mxu0 %v1689
        %v1805 = vpop.f32.mrf.mxu0
        %v1806 = vadd.f32 0.0, %v1805
        %1807 = vmatmul.f32.gmra.mxu0 %v1692
        %v1808 = vpop.f32.mrf.mxu0
        %v1809 = vadd.f32 0.0, %v1808
        %1810 = vmatmul.f32.gmra.mxu0 %v1695
        %v1811 = vpop.f32.mrf.mxu0
        %v1812 = vadd.f32 0.0, %v1811
        %1813 = vmatmul.f32.gmra.mxu0 %v1698
        %v1814 = vpop.f32.mrf.mxu0
        %v1815 = vadd.f32 0.0, %v1814
        %1816 = vmatmul.f32.gmra.mxu0 %v1701
        %v1817 = vpop.f32.mrf.mxu0
        %v1818 = vadd.f32 0.0, %v1817
        %1819 = vmatmul.f32.gmra.mxu0 %v1704
        %v1820 = vpop.f32.mrf.mxu0
        %v1821 = vadd.f32 0.0, %v1820
        %1822 = vmatmul.f32.gmra.mxu0 %v1707
        %v1823 = vpop.f32.mrf.mxu0
        %v1824 = vadd.f32 0.0, %v1823
        %1825 = vmatmul.f32.gmra.mxu0 %v1710
        %v1826 = vpop.f32.mrf.mxu0
        %v1827 = vadd.f32 0.0, %v1826
        %1828 = vmatmul.f32.gmra.mxu0 %v1713
        %v1829 = vpop.f32.mrf.mxu0
        %v1830 = vadd.f32 0.0, %v1829
        %1831 = vmatmul.f32.gmra.mxu0 %v1716
        %v1832 = vpop.f32.mrf.mxu0
        %v1833 = vadd.f32 0.0, %v1832
        %1834 = vmatmul.f32.gmra.mxu0 %v1719
        %v1835 = vpop.f32.mrf.mxu0
        %v1836 = vadd.f32 0.0, %v1835
        %1837 = vmatmul.f32.gmra.mxu0 %v1722
        %v1838 = vpop.f32.mrf.mxu0
        %v1839 = vadd.f32 0.0, %v1838
        %1840 = vmatmul.f32.gmra.mxu0 %v1725
        %v1841 = vpop.f32.mrf.mxu0
        %v1842 = vadd.f32 0.0, %v1841
        %1843 = vmatmul.f32.gmra.mxu0 %v1728
        %v1844 = vpop.f32.mrf.mxu0
        %v1845 = vadd.f32 0.0, %v1844
        %1846 = vmatmul.f32.gmra.mxu0 %v1731
        %v1847 = vpop.f32.mrf.mxu0
        %v1848 = vadd.f32 0.0, %v1847
        %1849 = vmatmul.f32.gmra.mxu0 %v1734
        %v1850 = vpop.f32.mrf.mxu0
        %v1851 = vadd.f32 0.0, %v1850
        %1852 = vmatmul.f32.gmra.mxu0 %v1737
        %v1853 = vpop.f32.mrf.mxu0
        %v1854 = vadd.f32 0.0, %v1853
        %1855 = vmatmul.f32.gmra.mxu0 %v1740
        %v1856 = vpop.f32.mrf.mxu0
        %v1857 = vadd.f32 0.0, %v1856
        %1858 = vmatmul.f32.gmra.mxu0 %v1743
        %v1859 = vpop.f32.mrf.mxu0
        %v1860 = vadd.f32 0.0, %v1859
        %1861 = vmatmul.f32.gmra.mxu0 %v1746
        %v1862 = vpop.f32.mrf.mxu0
        %v1863 = vadd.f32 0.0, %v1862
        %1864 = vmatmul.f32.gmra.mxu0 %v1749
        %v1865 = vpop.f32.mrf.mxu0
        %v1866 = vadd.f32 0.0, %v1865
        %1867 = vmatmul.f32.gmra.mxu0 %v1752
        %v1868 = vpop.f32.mrf.mxu0
        %v1869 = vadd.f32 0.0, %v1868
        %1870 = vmatmul.f32.gmra.mxu0 %v1755
        %v1871 = vpop.f32.mrf.mxu0
        %v1872 = vadd.f32 0.0, %v1871
        %1873 = vmatmul.f32.gmra.mxu0 %v1758
        %v1874 = vpop.f32.mrf.mxu0
        %v1875 = vadd.f32 0.0, %v1874
        %1876 = vmatmul.f32.gmra.mxu0 %v1761
        %v1877 = vpop.f32.mrf.mxu0
        %v1878 = vadd.f32 0.0, %v1877
        %1879 = vmatmul.f32.gmra.mxu0 %v1764
        %v1880 = vpop.f32.mrf.mxu0
        %v1881 = vadd.f32 0.0, %v1880
        %1882 = vmatmul.f32.gmra.mxu0 %v1767
        %v1883 = vpop.f32.mrf.mxu0
        %v1884 = vadd.f32 0.0, %v1883
        %1885 = vmatmul.f32.gmra.mxu0 %v1770
        %v1886 = vpop.f32.mrf.mxu0
        %v1887 = vadd.f32 0.0, %v1886
        %1888 = vdwg.mxu0
        %1889 = vst [vmem:[%s163] sm:$0xff] %v1794
        %1890 = vst [vmem:[%s163 + $0x8] sm:$0xff] %v1797
        %1891 = vst [vmem:[%s163 + $0x10] sm:$0xff] %v1800
        %1892 = vst [vmem:[%s163 + $0x18] sm:$0xff] %v1803
        %1893 = vst [vmem:[%s163 + $0x20] sm:$0xff] %v1806
        %1894 = vst [vmem:[%s163 + $0x28] sm:$0xff] %v1809
        %1895 = vst [vmem:[%s163 + $0x30] sm:$0xff] %v1812
        %1896 = vst [vmem:[%s163 + $0x38] sm:$0xff] %v1815
        %1897 = vst [vmem:[%s163 + $0x40] sm:$0xff] %v1818
        %1898 = vst [vmem:[%s163 + $0x48] sm:$0xff] %v1821
        %1899 = vst [vmem:[%s163 + $0x50] sm:$0xff] %v1824
        %1900 = vst [vmem:[%s163 + $0x58] sm:$0xff] %v1827
        %1901 = vst [vmem:[%s163 + $0x60] sm:$0xff] %v1830
        %1902 = vst [vmem:[%s163 + $0x68] sm:$0xff] %v1833
        %1903 = vst [vmem:[%s163 + $0x70] sm:$0xff] %v1836
        %1904 = vst [vmem:[%s163 + $0x78] sm:$0xff] %v1839
        %1905 = vst [vmem:[%s163 + $0x80] sm:$0xff] %v1842
        %1906 = vst [vmem:[%s163 + $0x88] sm:$0xff] %v1845
        %1907 = vst [vmem:[%s163 + $0x90] sm:$0xff] %v1848
        %1908 = vst [vmem:[%s163 + $0x98] sm:$0xff] %v1851
        %1909 = vst [vmem:[%s163 + $0xa0] sm:$0xff] %v1854
        %1910 = vst [vmem:[%s163 + $0xa8] sm:$0xff] %v1857
        %1911 = vst [vmem:[%s163 + $0xb0] sm:$0xff] %v1860
        %1912 = vst [vmem:[%s163 + $0xb8] sm:$0xff] %v1863
        %1913 = vst [vmem:[%s163 + $0xc0] sm:$0xff] %v1866
        %1914 = vst [vmem:[%s163 + $0xc8] sm:$0xff] %v1869
        %1915 = vst [vmem:[%s163 + $0xd0] sm:$0xff] %v1872
        %1916 = vst [vmem:[%s163 + $0xd8] sm:$0xff] %v1875
        %1917 = vst [vmem:[%s163 + $0xe0] sm:$0xff] %v1878
        %1918 = vst [vmem:[%s163 + $0xe8] sm:$0xff] %v1881
        %1919 = vst [vmem:[%s163 + $0xf0] sm:$0xff] %v1884
        %1920 = vst [vmem:[%s163 + $0xf8] sm:$0xff] %v1887
        %s1921 = sand.u32 %s90, 1
        %s1922 = scalar_lea.sflag [#allocation5], %s1921
        %s1923 = sand.u32 %s90, 1
        %s1924 = smul.addr %s1923, 256
        %s1925 = scalar_lea.vmem [#allocation4], %s1924
        // Predicated region
        $region33: #{tpu_custom_call.1} parent=27 // pred_check
          %p1926 = pneg %p100
        $region34: #{tpu_custom_call.1} parent=27 // pred_check_branch
          %1928 = sbr.rel (%p1926) target = $region36
        $region35: #{tpu_custom_call.1} parent=27 // pred_region
          %1930 = vsyncadd %s1922, 0
          %s1931 = smul.addr %s20, 32
          %s1932 = sadd.s32 %s21, %s1931
          %s1933 = smul.addr %s1932, 8
          %s1934 = scalar_lea.hbm %s2, %s1933
          %s1935 = sshll.u32 %s1925, 4
          %s1936 = int_to_ptr.vmem [resolvable:$true] %s1935
          %s1937 = sshll.u32 %s1934, 4
          %s1938 = int_to_ptr.hbm [resolvable:$true] %s1937
          %1943 = dma.vmem_to_hbm [thread:$0]  %s1936, 4096, %s1938, %s1922, 128, 128, 8
        $region36: #{tpu_custom_call.1} parent=27 // pred_fallthru
          _
      $region28: #{tpu_custom_call.1} parent=5 // pred_fallthru
        _
      %p1944 = scmp.le.s32.totalorder 2, %s11
      // Predicated region
      $region37: #{tpu_custom_call.1} parent=5 // pred_check
        %p1945 = pneg %p1944
      $region38: #{tpu_custom_call.1} parent=5 // pred_check_branch
        %1947 = sbr.rel (%p1945) target = $region40
      $region39: #{tpu_custom_call.1} parent=5 // pred_region
        %s1948 = ssub.s32 %s11, 2
        // Predicated region
        $region41: #{tpu_custom_call.1} parent=39 // pred_check
          %p1949 = pneg %p106
        $region42: #{tpu_custom_call.1} parent=39 // pred_check_branch
          %1951 = sbr.rel (%p1949) target = $region44
        $region43: #{tpu_custom_call.1} parent=39 // pred_region
          %s1952 = sand.u32 %s91, 1
          %s1953 = scalar_lea.sflag [#allocation5], %s1952
          %s1954 = sand.u32 %s91, 1
          %s1955 = smul.addr %s1954, 256
          %s1956 = scalar_lea.vmem [#allocation4], %s1955
          %1958 = dma.done %s1953, 4096
        $region44: #{tpu_custom_call.1} parent=39 // pred_fallthru
          _
      $region40: #{tpu_custom_call.1} parent=5 // pred_fallthru
        _
    $region6: #{tpu_custom_call.1} parent=1 // loop_footer
      %s15 = sadd.s32 1, %s11
    $region7: #{tpu_custom_call.1} parent=1 // loop_footer_branch
      %10 = sbr.rel target = $region3
    $region8: #{tpu_custom_call.1} parent=1 // loop_exit
      _
    %1959 = vsyncpa [#allocation5], 1
    %s1960 = scalar_lea.sflag [#allocation5], 1
    %1961 = vsyncpa %s1960, 1

</llo_original>
